<compile_context>
chip_gen: v7x
topology: tpu7x:2x2x1
jax: 0.10.0
libtpu: 0.0.40
codegen_flags: <defaults>
</compile_context>

<pallas_src>
import functools

import jax
import jax.numpy as jnp
from jax import lax
from jax.experimental import pallas as pl
from jax.experimental.pallas import tpu as pltpu

_EPS = 1e-5  # PyTorch BatchNorm1d default eps


# ----------------------------------------------------------- in-kernel building blocks
def _conv_k3(x3, w3, matmul_dtype):
    """k=3 'same' Conv1d on a sample-major block.

    x3: (c, Cj, L) activation block (f32); w3: (3, Cout, Cj) tap-major weights
    (already in matmul_dtype).  Returns (c, Cout, L) float32.

    The three taps are built with pltpu.roll along L + a per-position boundary
    mask, and accumulated as three batched MXU dots (no (3*Cj, ...) concat).
    """
    c, _, l = x3.shape
    cout = w3.shape[1]
    pos = lax.broadcasted_iota(jnp.int32, (1, 1, l), 2)
    left = jnp.where(pos > 0, pltpu.roll(x3, shift=1, axis=2), 0.0)       # x[t-1]
    right = jnp.where(pos < l - 1, pltpu.roll(x3, shift=l - 1, axis=2), 0.0)  # x[t+1]
    acc = None
    for k, tap in enumerate((left, x3, right)):
        wk = jnp.broadcast_to(w3[k], (c, cout, w3.shape[2]))
        hk = lax.dot_general(
            wk, tap.astype(matmul_dtype),
            dimension_numbers=(((2,), (1,)), ((0,), (0,))),
            preferred_element_type=jnp.float32)
        acc = hk if acc is None else acc + hk
    return acc


def _accum_channel_stats(h, s_ref, ss_ref, is_first):
    """Accumulate per-channel (sum, sumsq) of h (c, Cout, L) into (1, Cout, 1) refs."""
    @pl.when(is_first)
    def _():
        s_ref[...] = jnp.zeros_like(s_ref)
        ss_ref[...] = jnp.zeros_like(ss_ref)

    # TODO(synk): E[x^2]-E[x]^2 in f32 can cancel badly for channels with a large
    # DC offset; switch to per-chunk centered partial sums if that ever matters.
    s_ref[...] += jnp.sum(jnp.sum(h, axis=2, keepdims=True), axis=0, keepdims=True)
    ss_ref[...] += jnp.sum(jnp.sum(h * h, axis=2, keepdims=True), axis=0, keepdims=True)


# ----------------------------------------------------------------------------- kernels
def _fused_kernel(x_ref, w1_ref, w2_ref, g1_ref, be1_ref,         # inputs
                  h2_ref, s2_ref, ss2_ref,                        # outputs
                  h1_ref, s1_ref, ss1_ref, sc1_ref, sh1_ref,      # scratch
                  *, count, matmul_dtype):
    """grid=(2, num_chunks): phase 0 = conv1 + BN1 stats (h1 stays in VMEM),
    phase 1 = BN1 affine + ReLU + conv2 + BN2 stats (h2 streamed to HBM)."""
    phase = pl.program_id(0)
    i = pl.program_id(1)

    @pl.when(phase == 0)
    def _():
        h = _conv_k3(x_ref[...].astype(jnp.float32), w1_ref[...], matmul_dtype)
        h1_ref[i] = h.astype(h1_ref.dtype)
        _accum_channel_stats(h, s1_ref, ss1_ref, i == 0)

    @pl.when(phase == 1)
    def _():
        @pl.when(i == 0)                       # finalize BN1 (batch stats, biased var)
        def _():
            inv = 1.0 / count
            mean = s1_ref[...] * inv
            var = jnp.maximum(ss1_ref[...] * inv - mean * mean, 0.0)
            scale = g1_ref[...] * lax.rsqrt(var + _EPS)
            sc1_ref[...] = scale
            sh1_ref[...] = be1_ref[...] - mean * scale

        a = jnp.maximum(h1_ref[i].astype(jnp.float32) * sc1_ref[...] + sh1_ref[...], 0.0)
        h = _conv_k3(a, w2_ref[...], matmul_dtype)
        h2_ref[...] = h.astype(h2_ref.dtype)
        _accum_channel_stats(h, s2_ref, ss2_ref, i == 0)


def _conv_stats_kernel(x_ref, w_ref, h_ref, s_ref, ss_ref, *, matmul_dtype):
    """Fallback pass A: conv1 on one chunk + accumulate per-channel (sum, sumsq)."""
    h = _conv_k3(x_ref[...].astype(jnp.float32), w_ref[...], matmul_dtype)
    h_ref[...] = h.astype(h_ref.dtype)
    _accum_channel_stats(h, s_ref, ss_ref, pl.program_id(0) == 0)


def _bn_relu_conv_stats_kernel(h1_ref, sc_ref, sh_ref, w_ref, h2_ref, s_ref, ss_ref,
                               *, matmul_dtype):
    """Fallback pass B: BN1 affine + ReLU + conv2 + accumulate BN2 stats."""
    a = jnp.maximum(h1_ref[...].astype(jnp.float32) * sc_ref[...] + sh_ref[...], 0.0)
    h = _conv_k3(a, w_ref[...], matmul_dtype)
    h2_ref[...] = h.astype(h2_ref.dtype)
    _accum_channel_stats(h, s_ref, ss_ref, pl.program_id(0) == 0)


# ------------------------------------------------------------------------ host helpers
def _bn_affine(s, ss, count, gamma, beta):
    """Finalize BN (training mode, biased variance) into per-channel scale/shift."""
    mean = s / count
    var = jnp.maximum(ss / count - mean * mean, 0.0)
    scale = gamma * lax.rsqrt(var + _EPS)
    shift = beta - mean * scale
    return scale, shift


def _vmem_capacity_bytes():
    try:
        return int(pltpu.get_tpu_info().vmem_capacity_bytes)
    except Exception:
        return 64 * 1024 * 1024        # v7x-safe fallback


def _pick_samples_per_chunk(n, per_step_bytes, budget, fixed_bytes):
    """Largest divisor of n whose per-step VMEM estimate fits the budget."""
    for c in range(n, 0, -1):
        if n % c:
            continue
        if fixed_bytes + per_step_bytes(c) <= budget:
            return c, True
    return 1, False


# ---------------------------------------------------------------------------- wrapper
def resconv_forward(x, params, *, matmul_dtype=jnp.bfloat16, store_dtype=jnp.bfloat16,
                    samples_per_chunk=None, force_two_pass=False):
    n, cin, l = x.shape
    cout = params["w1"].shape[0]
    count = float(n * l)

    # tap-major weights (3, Cout, Cj), pre-cast to the MXU operand dtype.
    # Conv biases b1/b2 are intentionally dropped: training-mode BatchNorm with
    # batch statistics cancels a per-channel bias exactly.
    w1t = jnp.transpose(params["w1"], (2, 0, 1)).astype(matmul_dtype)
    w2t = jnp.transpose(params["w2"], (2, 0, 1)).astype(matmul_dtype)
    g1 = params["g1"].reshape(1, cout, 1).astype(jnp.float32)
    be1 = params["be1"].reshape(1, cout, 1).astype(jnp.float32)
    g2 = params["g2"].reshape(1, cout, 1).astype(jnp.float32)
    be2 = params["be2"].reshape(1, cout, 1).astype(jnp.float32)

    x_bytes = jnp.dtype(x.dtype).itemsize
    st_bytes = jnp.dtype(store_dtype).itemsize
    vmem_limit = min(int(_vmem_capacity_bytes() * 0.75), 96 * 1024 * 1024)
    budget = int(vmem_limit * 0.6)
    h1_resident_bytes = n * cout * l * st_bytes

    def per_step_bytes(c):
        return (2 * c * cin * l * x_bytes          # x input block (double-buffered)
                + 2 * c * cout * l * st_bytes      # activation block in/out (double-buffered)
                + 10 * c * max(cin, cout) * l * 4)  # f32 taps / accumulators / temporaries

    if samples_per_chunk is not None:
        c = int(samples_per_chunk)
        assert n % c == 0, "samples_per_chunk must divide the batch"
        fused = (not force_two_pass) and (h1_resident_bytes + per_step_bytes(c) <= budget)
    else:
        fused = False
        if not force_two_pass:
            c, fused = _pick_samples_per_chunk(n, per_step_bytes, budget, h1_resident_bytes)
        if not fused:
            c, _ = _pick_samples_per_chunk(n, per_step_bytes, budget, 0)
            # TODO(synk): add L-tiling with a 1-element halo for the case where even a
            # single sample per step does not fit in VMEM (very long sequences).
    nc = n // c

    stat_sds = jax.ShapeDtypeStruct((1, cout, 1), jnp.float32)
    h_sds = jax.ShapeDtypeStruct((n, cout, l), store_dtype)

    if fused:
        # x is re-fetched only while phase==0 (the index is pinned afterwards,
        # so the pipeline skips the DMA); h2 is written only in phase 1.
        x_spec = pl.BlockSpec((c, cin, l), lambda p, i: (i + p * (nc - 1 - i), 0, 0))
        w1_spec = pl.BlockSpec((3, cout, cin), lambda p, i: (0, 0, 0))
        w2_spec = pl.BlockSpec((3, cout, cout), lambda p, i: (0, 0, 0))
        vec_spec = pl.BlockSpec((1, cout, 1), lambda p, i: (0, 0, 0))
        h2_spec = pl.BlockSpec((c, cout, l), lambda p, i: (i * p, 0, 0))

        h2, s2, ss2 = pl.pallas_call(
            functools.partial(_fused_kernel, count=count, matmul_dtype=matmul_dtype),
            grid=(2, nc),
            in_specs=[x_spec, w1_spec, w2_spec, vec_spec, vec_spec],
            out_specs=[h2_spec, vec_spec, vec_spec],
            out_shape=[h_sds, stat_sds, stat_sds],
            scratch_shapes=[pltpu.VMEM((nc, c, cout, l), store_dtype)]
                          + [pltpu.VMEM((1, cout, 1), jnp.float32)] * 4,
            compiler_params=pltpu.CompilerParams(
                dimension_semantics=("arbitrary", "arbitrary"),
                vmem_limit_bytes=vmem_limit),
        )(x, w1t, w2t, g1, be1)
    else:
        # TODO(synk): on v7x (2 TensorCores) split the chunk axis across cores with a
        # ("parallel", "arbitrary") grid and per-core partial stats reduced on host.
        x_spec = pl.BlockSpec((c, cin, l), lambda i: (i, 0, 0))
        act_spec = pl.BlockSpec((c, cout, l), lambda i: (i, 0, 0))
        w1_spec = pl.BlockSpec((3, cout, cin), lambda i: (0, 0, 0))
        w2_spec = pl.BlockSpec((3, cout, cout), lambda i: (0, 0, 0))
        vec_spec = pl.BlockSpec((1, cout, 1), lambda i: (0, 0, 0))
        cparams = pltpu.CompilerParams(dimension_semantics=("arbitrary",),
                                       vmem_limit_bytes=vmem_limit)

        h1, s1, ss1 = pl.pallas_call(
            functools.partial(_conv_stats_kernel, matmul_dtype=matmul_dtype),
            grid=(nc,),
            in_specs=[x_spec, w1_spec],
            out_specs=[act_spec, vec_spec, vec_spec],
            out_shape=[h_sds, stat_sds, stat_sds],
            compiler_params=cparams,
        )(x, w1t)

        sc1, sh1 = _bn_affine(s1, ss1, count, g1, be1)

        h2, s2, ss2 = pl.pallas_call(
            functools.partial(_bn_relu_conv_stats_kernel, matmul_dtype=matmul_dtype),
            grid=(nc,),
            in_specs=[act_spec, vec_spec, vec_spec, w2_spec],
            out_specs=[act_spec, vec_spec, vec_spec],
            out_shape=[h_sds, stat_sds, stat_sds],
            compiler_params=cparams,
        )(h1, sc1, sh1, w2t)

    # BN2 per-channel FMA + residual concat: left to XLA so it fuses with the
    # single read of h2 / x and the output write.  h2 is already sample-major,
    # so there is no transpose left.
    sc2, sh2 = _bn_affine(s2, ss2, count, g2, be2)
    h_out = (h2.astype(jnp.float32) * sc2 + sh2).astype(x.dtype)
    return jnp.concatenate([x, h_out], axis=1)


# ------------------------------------------------------- deterministic parameters
def init_params(key, cin, cout):
    ks = jax.random.split(key, 6)
    return {
        "w1": 0.1 * jax.random.normal(ks[0], (cout, cin, 3), jnp.float32),
        "b1": 0.1 * jax.random.normal(ks[1], (cout, 1), jnp.float32),
        "g1": 1.0 + 0.1 * jax.random.normal(ks[2], (cout, 1), jnp.float32),
        "be1": 0.05 * jax.random.normal(ks[3], (cout, 1), jnp.float32),
        "w2": 0.1 * jax.random.normal(ks[4], (cout, cout, 3), jnp.float32),
        "b2": 0.1 * jax.random.normal(ks[5], (cout, 1), jnp.float32),
        "g2": jnp.ones((cout, 1), jnp.float32),
        "be2": jnp.zeros((cout, 1), jnp.float32),
    }


# ------------------------------------------------------------- plain-JAX reference
def _ref_forward(x, p):
    def conv(h, w, b):
        y = lax.conv_general_dilated(h, w, window_strides=(1,), padding="SAME",
                                     dimension_numbers=("NCH", "OIH", "NCH"),
                                     precision=lax.Precision.HIGHEST)
        return y + b[None, :, :]

    def bn(h, g, be):
        m = jnp.mean(h, axis=(0, 2), keepdims=True)
        v = jnp.mean((h - m) ** 2, axis=(0, 2), keepdims=True)
        return (h - m) / jnp.sqrt(v + _EPS) * g[None, :, :] + be[None, :, :]

    h = conv(x, p["w1"], p["b1"])
    h = bn(h, p["g1"], p["be1"])
    h = jnp.maximum(h, 0.0)
    h = conv(h, p["w2"], p["b2"])
    h = bn(h, p["g2"], p["be2"])
    return jnp.concatenate([x, h], axis=1)


if __name__ == "__main__":
    key = jax.random.PRNGKey(0)
    kx1, kp1, kx2, kp2 = jax.random.split(key, 4)

    # config 1: lane-aligned L, 2 chunks -> fused A+B path with in-kernel BN1
    # finalize and cross-chunk stat accumulation (f32 everywhere).
    N, CIN, COUT, L = 4, 4, 8, 128
    x1 = jax.random.normal(kx1, (N, CIN, L), jnp.float32)
    p1 = init_params(kp1, CIN, COUT)
    ref1 = _ref_forward(x1, p1)

    out1 = jax.block_until_ready(resconv_forward(
        x1, p1, matmul_dtype=jnp.float32, store_dtype=jnp.float32, samples_per_chunk=2))
    assert out1.shape == (N, CIN + COUT, L), out1.shape
    err1 = float(jnp.max(jnp.abs(out1 - ref1)))
    assert err1 < 1e-3, f"config1 (fused, f32) max abs err = {err1}"

    # config 2: same problem through the 2-call fallback path (f32).
    out2 = jax.block_until_ready(resconv_forward(
        x1, p1, matmul_dtype=jnp.float32, store_dtype=jnp.float32,
        samples_per_chunk=2, force_two_pass=True))
    err2 = float(jnp.max(jnp.abs(out2 - ref1)))
    assert err2 < 1e-3, f"config2 (two-pass, f32) max abs err = {err2}"

    # config 3: odd channel counts, short L, single chunk (f32, fused).
    N3, CIN3, COUT3, L3 = 2, 3, 5, 16
    x3 = jax.random.normal(kx2, (N3, CIN3, L3), jnp.float32)
    p3 = init_params(kp2, CIN3, COUT3)
    out3 = jax.block_until_ready(resconv_forward(
        x3, p3, matmul_dtype=jnp.float32, store_dtype=jnp.float32))
    ref3 = _ref_forward(x3, p3)
    assert out3.shape == (N3, CIN3 + COUT3, L3), out3.shape
    err3 = float(jnp.max(jnp.abs(out3 - ref3)))
    assert err3 < 1e-3, f"config3 (fused, f32, odd channels) max abs err = {err3}"

    # config 4: default path — bf16 intermediates + bf16 MXU operands.
    out4 = jax.block_until_ready(resconv_forward(x1, p1, samples_per_chunk=2))
    err4 = float(jnp.max(jnp.abs(out4 - ref1)))
    assert err4 < 2e-1, f"config4 (fused, bf16) max abs err = {err4}"

    print("KERNEL_OK")
</pallas_src>

<mosaic_0001>
module attributes {stable_mosaic.version = 11 : i64} {
  func.func @_fused_kernel(%arg0: i32, %arg1: i32, %arg2: memref<2x4x128xf32, #tpu.memory_space<vmem>>, %arg3: memref<3x8x4xf32, #tpu.memory_space<vmem>>, %arg4: memref<3x8x8xf32, #tpu.memory_space<vmem>>, %arg5: memref<1x8x1xf32, #tpu.memory_space<vmem>>, %arg6: memref<1x8x1xf32, #tpu.memory_space<vmem>>, %arg7: memref<2x8x128xf32, #tpu.memory_space<vmem>>, %arg8: memref<1x8x1xf32, #tpu.memory_space<vmem>>, %arg9: memref<1x8x1xf32, #tpu.memory_space<vmem>>, %arg10: memref<2x2x8x128xf32, #tpu.memory_space<vmem>>, %arg11: memref<1x8x1xf32, #tpu.memory_space<vmem>>, %arg12: memref<1x8x1xf32, #tpu.memory_space<vmem>>, %arg13: memref<1x8x1xf32, #tpu.memory_space<vmem>>, %arg14: memref<1x8x1xf32, #tpu.memory_space<vmem>>) attributes {dimension_semantics = [#tpu.dimension_semantics<arbitrary>, #tpu.dimension_semantics<arbitrary>], iteration_bounds = array<i64: 2, 2>, scalar_prefetch = 0 : i64, scratch_operands = 5 : i64, tpu.core_type = #tpu.core_type<tc>, window_params = [{transform_indices = @transform_0, window_bounds = array<i64: 2, 4, 128>}, {pipeline_mode = #tpu.pipeline_mode<synchronous>, transform_indices = @transform_1, window_bounds = array<i64: 3, 8, 4>}, {pipeline_mode = #tpu.pipeline_mode<synchronous>, transform_indices = @transform_2, window_bounds = array<i64: 3, 8, 8>}, {pipeline_mode = #tpu.pipeline_mode<synchronous>, transform_indices = @transform_3, window_bounds = array<i64: 1, 8, 1>}, {pipeline_mode = #tpu.pipeline_mode<synchronous>, transform_indices = @transform_4, window_bounds = array<i64: 1, 8, 1>}, {transform_indices = @transform_5, window_bounds = array<i64: 2, 8, 128>}, {pipeline_mode = #tpu.pipeline_mode<synchronous>, transform_indices = @transform_6, window_bounds = array<i64: 1, 8, 1>}, {pipeline_mode = #tpu.pipeline_mode<synchronous>, transform_indices = @transform_7, window_bounds = array<i64: 1, 8, 1>}]} {
    %c0_i32 = arith.constant 0 : i32
    %0 = arith.cmpi eq, %arg0, %c0_i32 : i32
    %1 = arith.extui %0 : i1 to i32
    %c0_i32_0 = arith.constant 0 : i32
    %2 = arith.cmpi ne, %1, %c0_i32_0 : i32
    scf.if %2 {
      %c0 = arith.constant 0 : index
      %c0_2 = arith.constant 0 : index
      %c0_3 = arith.constant 0 : index
      %6 = vector.load %arg2[%c0, %c0_2, %c0_3] : memref<2x4x128xf32, #tpu.memory_space<vmem>>, vector<2x4x128xf32>
      %c0_4 = arith.constant 0 : index
      %c0_5 = arith.constant 0 : index
      %c0_6 = arith.constant 0 : index
      %7 = vector.load %arg3[%c0_4, %c0_5, %c0_6] : memref<3x8x4xf32, #tpu.memory_space<vmem>>, vector<3x8x4xf32>
      %8 = tpu.iota {dimensions = array<i32: 2>} : vector<1x1x128xi32>
      %c0_i32_7 = arith.constant 0 : i32
      %9 = vector.broadcast %c0_i32_7 : i32 to vector<1x1x128xi32>
      %10 = arith.cmpi sgt, %8, %9 : vector<1x1x128xi32>
      %c1_i32_8 = arith.constant 1 : i32
      %11 = tpu.dynamic_rotate %6 by %c1_i32_8 dim 2 : vector<2x4x128xf32>, i32 -> vector<2x4x128xf32>
      %cst = arith.constant 0.000000e+00 : f32
      %12 = vector.shape_cast %10 : vector<1x1x128xi1> to vector<1x1x128xi1>
      %13 = vector.broadcast %12 : vector<1x1x128xi1> to vector<2x4x128xi1>
      %14 = vector.broadcast %cst : f32 to vector<2x4x128xf32>
      %15 = arith.select %13, %11, %14 : vector<2x4x128xi1>, vector<2x4x128xf32>
      %c127_i32 = arith.constant 127 : i32
      %16 = vector.broadcast %c127_i32 : i32 to vector<1x1x128xi32>
      %17 = arith.cmpi slt, %8, %16 : vector<1x1x128xi32>
      %c127_i32_9 = arith.constant 127 : i32
      %18 = tpu.dynamic_rotate %6 by %c127_i32_9 dim 2 : vector<2x4x128xf32>, i32 -> vector<2x4x128xf32>
      %cst_10 = arith.constant 0.000000e+00 : f32
      %19 = vector.shape_cast %17 : vector<1x1x128xi1> to vector<1x1x128xi1>
      %20 = vector.broadcast %19 : vector<1x1x128xi1> to vector<2x4x128xi1>
      %21 = vector.broadcast %cst_10 : f32 to vector<2x4x128xf32>
      %22 = arith.select %20, %18, %21 : vector<2x4x128xi1>, vector<2x4x128xf32>
      %23 = vector.extract_strided_slice %7 {offsets = [0, 0, 0], sizes = [1, 8, 4], strides = [1, 1, 1]} : vector<3x8x4xf32> to vector<1x8x4xf32>
      %24 = vector.shape_cast %23 : vector<1x8x4xf32> to vector<8x4xf32>
      %25 = vector.shape_cast %24 : vector<8x4xf32> to vector<1x8x4xf32>
      %26 = vector.broadcast %25 : vector<1x8x4xf32> to vector<2x8x4xf32>
      %cst_11 = arith.constant dense<0.000000e+00> : vector<2x8x128xf32>
      %27 = tpu.matmul %26, %15, %cst_11 {dimension_numbers = #tpu.dot_dimension_numbers<[2], [1], [1], [2], [0, 0, 0, 1, 1, 2], [0], [0]>} : vector<2x8x4xf32>, vector<2x4x128xf32>, vector<2x8x128xf32> -> vector<2x8x128xf32>
      %28 = vector.extract_strided_slice %7 {offsets = [1, 0, 0], sizes = [1, 8, 4], strides = [1, 1, 1]} : vector<3x8x4xf32> to vector<1x8x4xf32>
      %29 = vector.shape_cast %28 : vector<1x8x4xf32> to vector<8x4xf32>
      %30 = vector.shape_cast %29 : vector<8x4xf32> to vector<1x8x4xf32>
      %31 = vector.broadcast %30 : vector<1x8x4xf32> to vector<2x8x4xf32>
      %cst_12 = arith.constant dense<0.000000e+00> : vector<2x8x128xf32>
      %32 = tpu.matmul %31, %6, %cst_12 {dimension_numbers = #tpu.dot_dimension_numbers<[2], [1], [1], [2], [0, 0, 0, 1, 1, 2], [0], [0]>} : vector<2x8x4xf32>, vector<2x4x128xf32>, vector<2x8x128xf32> -> vector<2x8x128xf32>
      %33 = arith.addf %27, %32 : vector<2x8x128xf32>
      %34 = vector.extract_strided_slice %7 {offsets = [2, 0, 0], sizes = [1, 8, 4], strides = [1, 1, 1]} : vector<3x8x4xf32> to vector<1x8x4xf32>
      %35 = vector.shape_cast %34 : vector<1x8x4xf32> to vector<8x4xf32>
      %36 = vector.shape_cast %35 : vector<8x4xf32> to vector<1x8x4xf32>
      %37 = vector.broadcast %36 : vector<1x8x4xf32> to vector<2x8x4xf32>
      %cst_13 = arith.constant dense<0.000000e+00> : vector<2x8x128xf32>
      %38 = tpu.matmul %37, %22, %cst_13 {dimension_numbers = #tpu.dot_dimension_numbers<[2], [1], [1], [2], [0, 0, 0, 1, 1, 2], [0], [0]>} : vector<2x8x4xf32>, vector<2x4x128xf32>, vector<2x8x128xf32> -> vector<2x8x128xf32>
      %39 = arith.addf %33, %38 : vector<2x8x128xf32>
      %40 = arith.index_cast %arg1 : i32 to index
      %c0_14 = arith.constant 0 : index
      %c0_15 = arith.constant 0 : index
      %c0_16 = arith.constant 0 : index
      %41 = vector.load %arg10[%40, %c0_14, %c0_15, %c0_16] : memref<2x2x8x128xf32, #tpu.memory_space<vmem>>, vector<1x2x8x128xf32>
      %42 = vector.shape_cast %41 : vector<1x2x8x128xf32> to vector<2x8x128xf32>
      %43 = vector.shape_cast %39 : vector<2x8x128xf32> to vector<1x2x8x128xf32>
      tpu.vector_store %arg10[%40, %c0_14, %c0_15, %c0_16], %43 {strides = array<i32>} : memref<2x2x8x128xf32, #tpu.memory_space<vmem>>, vector<1x2x8x128xf32>,
      %c0_i32_17 = arith.constant 0 : i32
      %44 = arith.cmpi eq, %arg1, %c0_i32_17 : i32
      %45 = arith.extui %44 : i1 to i32
      %c0_i32_18 = arith.constant 0 : i32
      %46 = arith.cmpi ne, %45, %c0_i32_18 : i32
      scf.if %46 {
        %cst_35 = arith.constant 0.000000e+00 : f32
        %62 = vector.broadcast %cst_35 : f32 to vector<1x8x1xf32>
        %c0_36 = arith.constant 0 : index
        %c0_37 = arith.constant 0 : index
        %c0_38 = arith.constant 0 : index
        %63 = vector.load %arg11[%c0_36, %c0_37, %c0_38] : memref<1x8x1xf32, #tpu.memory_space<vmem>>, vector<1x8x1xf32>
        tpu.vector_store %arg11[%c0_36, %c0_37, %c0_38], %62 {strides = array<i32>} : memref<1x8x1xf32, #tpu.memory_space<vmem>>, vector<1x8x1xf32>,
        %cst_39 = arith.constant 0.000000e+00 : f32
        %64 = vector.broadcast %cst_39 : f32 to vector<1x8x1xf32>
        %c0_40 = arith.constant 0 : index
        %c0_41 = arith.constant 0 : index
        %c0_42 = arith.constant 0 : index
        %65 = vector.load %arg12[%c0_40, %c0_41, %c0_42] : memref<1x8x1xf32, #tpu.memory_space<vmem>>, vector<1x8x1xf32>
        tpu.vector_store %arg12[%c0_40, %c0_41, %c0_42], %64 {strides = array<i32>} : memref<1x8x1xf32, #tpu.memory_space<vmem>>, vector<1x8x1xf32>,
      } else {
      }
      %c0_19 = arith.constant 0 : index
      %c0_20 = arith.constant 0 : index
      %c0_21 = arith.constant 0 : index
      %47 = vector.load %arg11[%c0_19, %c0_20, %c0_21] : memref<1x8x1xf32, #tpu.memory_space<vmem>>, vector<1x8x1xf32>
      %cst_22 = arith.constant dense<0.000000e+00> : vector<2x8xf32>
      %48 = vector.multi_reduction <add>, %39, %cst_22 [2] : vector<2x8x128xf32> to vector<2x8xf32>
      %49 = vector.shape_cast %48 : vector<2x8xf32> to vector<2x8x1xf32>
      %cst_23 = arith.constant dense<0.000000e+00> : vector<8x1xf32>
      %50 = vector.multi_reduction <add>, %49, %cst_23 [0] : vector<2x8x1xf32> to vector<8x1xf32>
      %51 = vector.shape_cast %50 : vector<8x1xf32> to vector<1x8x1xf32>
      %52 = arith.addf %47, %51 : vector<1x8x1xf32>
      %c0_24 = arith.constant 0 : index
      %c0_25 = arith.constant 0 : index
      %c0_26 = arith.constant 0 : index
      %53 = vector.load %arg11[%c0_24, %c0_25, %c0_26] : memref<1x8x1xf32, #tpu.memory_space<vmem>>, vector<1x8x1xf32>
      tpu.vector_store %arg11[%c0_24, %c0_25, %c0_26], %52 {strides = array<i32>} : memref<1x8x1xf32, #tpu.memory_space<vmem>>, vector<1x8x1xf32>,
      %c0_27 = arith.constant 0 : index
      %c0_28 = arith.constant 0 : index
      %c0_29 = arith.constant 0 : index
      %54 = vector.load %arg12[%c0_27, %c0_28, %c0_29] : memref<1x8x1xf32, #tpu.memory_space<vmem>>, vector<1x8x1xf32>
      %55 = arith.mulf %39, %39 : vector<2x8x128xf32>
      %cst_30 = arith.constant dense<0.000000e+00> : vector<2x8xf32>
      %56 = vector.multi_reduction <add>, %55, %cst_30 [2] : vector<2x8x128xf32> to vector<2x8xf32>
      %57 = vector.shape_cast %56 : vector<2x8xf32> to vector<2x8x1xf32>
      %cst_31 = arith.constant dense<0.000000e+00> : vector<8x1xf32>
      %58 = vector.multi_reduction <add>, %57, %cst_31 [0] : vector<2x8x1xf32> to vector<8x1xf32>
      %59 = vector.shape_cast %58 : vector<8x1xf32> to vector<1x8x1xf32>
      %60 = arith.addf %54, %59 : vector<1x8x1xf32>
      %c0_32 = arith.constant 0 : index
      %c0_33 = arith.constant 0 : index
      %c0_34 = arith.constant 0 : index
      %61 = vector.load %arg12[%c0_32, %c0_33, %c0_34] : memref<1x8x1xf32, #tpu.memory_space<vmem>>, vector<1x8x1xf32>
      tpu.vector_store %arg12[%c0_32, %c0_33, %c0_34], %60 {strides = array<i32>} : memref<1x8x1xf32, #tpu.memory_space<vmem>>, vector<1x8x1xf32>,
    } else {
    }
    %c1_i32 = arith.constant 1 : i32
    %3 = arith.cmpi eq, %arg0, %c1_i32 : i32
    %4 = arith.extui %3 : i1 to i32
    %c0_i32_1 = arith.constant 0 : i32
    %5 = arith.cmpi ne, %4, %c0_i32_1 : i32
    scf.if %5 {
      %c0_i32_2 = arith.constant 0 : i32
      %6 = arith.cmpi eq, %arg1, %c0_i32_2 : i32
      %7 = arith.extui %6 : i1 to i32
      %c0_i32_3 = arith.constant 0 : i32
      %8 = arith.cmpi ne, %7, %c0_i32_3 : i32
      scf.if %8 {
        %c0_44 = arith.constant 0 : index
        %c0_45 = arith.constant 0 : index
        %c0_46 = arith.constant 0 : index
        %72 = vector.load %arg11[%c0_44, %c0_45, %c0_46] : memref<1x8x1xf32, #tpu.memory_space<vmem>>, vector<1x8x1xf32>
        %cst_47 = arith.constant 0.001953125 : f32
        %73 = vector.broadcast %cst_47 : f32 to vector<1x8x1xf32>
        %74 = arith.mulf %72, %73 : vector<1x8x1xf32>
        %c0_48 = arith.constant 0 : index
        %c0_49 = arith.constant 0 : index
        %c0_50 = arith.constant 0 : index
        %75 = vector.load %arg12[%c0_48, %c0_49, %c0_50] : memref<1x8x1xf32, #tpu.memory_space<vmem>>, vector<1x8x1xf32>
        %cst_51 = arith.constant 0.001953125 : f32
        %76 = vector.broadcast %cst_51 : f32 to vector<1x8x1xf32>
        %77 = arith.mulf %75, %76 : vector<1x8x1xf32>
        %78 = arith.mulf %74, %74 : vector<1x8x1xf32>
        %79 = arith.subf %77, %78 : vector<1x8x1xf32>
        %cst_52 = arith.constant 0.000000e+00 : f32
        %80 = vector.broadcast %cst_52 : f32 to vector<1x8x1xf32>
        %81 = arith.maximumf %79, %80 : vector<1x8x1xf32>
        %c0_53 = arith.constant 0 : index
        %c0_54 = arith.constant 0 : index
        %c0_55 = arith.constant 0 : index
        %82 = vector.load %arg5[%c0_53, %c0_54, %c0_55] : memref<1x8x1xf32, #tpu.memory_space<vmem>>, vector<1x8x1xf32>
        %cst_56 = arith.constant 9.99999974E-6 : f32
        %83 = vector.broadcast %cst_56 : f32 to vector<1x8x1xf32>
        %84 = arith.addf %81, %83 : vector<1x8x1xf32>
        %85 = math.rsqrt %84 : vector<1x8x1xf32>
        %86 = arith.mulf %82, %85 : vector<1x8x1xf32>
        %c0_57 = arith.constant 0 : index
        %c0_58 = arith.constant 0 : index
        %c0_59 = arith.constant 0 : index
        %87 = vector.load %arg13[%c0_57, %c0_58, %c0_59] : memref<1x8x1xf32, #tpu.memory_space<vmem>>, vector<1x8x1xf32>
        tpu.vector_store %arg13[%c0_57, %c0_58, %c0_59], %86 {strides = array<i32>} : memref<1x8x1xf32, #tpu.memory_space<vmem>>, vector<1x8x1xf32>,
        %c0_60 = arith.constant 0 : index
        %c0_61 = arith.constant 0 : index
        %c0_62 = arith.constant 0 : index
        %88 = vector.load %arg6[%c0_60, %c0_61, %c0_62] : memref<1x8x1xf32, #tpu.memory_space<vmem>>, vector<1x8x1xf32>
        %89 = arith.mulf %74, %86 : vector<1x8x1xf32>
        %90 = arith.subf %88, %89 : vector<1x8x1xf32>
        %c0_63 = arith.constant 0 : index
        %c0_64 = arith.constant 0 : index
        %c0_65 = arith.constant 0 : index
        %91 = vector.load %arg14[%c0_63, %c0_64, %c0_65] : memref<1x8x1xf32, #tpu.memory_space<vmem>>, vector<1x8x1xf32>
        tpu.vector_store %arg14[%c0_63, %c0_64, %c0_65], %90 {strides = array<i32>} : memref<1x8x1xf32, #tpu.memory_space<vmem>>, vector<1x8x1xf32>,
      } else {
      }
      %9 = arith.index_cast %arg1 : i32 to index
      %c0 = arith.constant 0 : index
      %c0_4 = arith.constant 0 : index
      %c0_5 = arith.constant 0 : index
      %10 = vector.load %arg10[%9, %c0, %c0_4, %c0_5] : memref<2x2x8x128xf32, #tpu.memory_space<vmem>>, vector<1x2x8x128xf32>
      %11 = vector.shape_cast %10 : vector<1x2x8x128xf32> to vector<2x8x128xf32>
      %c0_6 = arith.constant 0 : index
      %c0_7 = arith.constant 0 : index
      %c0_8 = arith.constant 0 : index
      %12 = vector.load %arg13[%c0_6, %c0_7, %c0_8] : memref<1x8x1xf32, #tpu.memory_space<vmem>>, vector<1x8x1xf32>
      %13 = vector.broadcast %12 : vector<1x8x1xf32> to vector<2x8x128xf32>
      %14 = arith.mulf %11, %13 : vector<2x8x128xf32>
      %c0_9 = arith.constant 0 : index
      %c0_10 = arith.constant 0 : index
      %c0_11 = arith.constant 0 : index
      %15 = vector.load %arg14[%c0_9, %c0_10, %c0_11] : memref<1x8x1xf32, #tpu.memory_space<vmem>>, vector<1x8x1xf32>
      %16 = vector.broadcast %15 : vector<1x8x1xf32> to vector<2x8x128xf32>
      %17 = arith.addf %14, %16 : vector<2x8x128xf32>
      %cst = arith.constant 0.000000e+00 : f32
      %18 = vector.broadcast %cst : f32 to vector<2x8x128xf32>
      %19 = arith.maximumf %17, %18 : vector<2x8x128xf32>
      %c0_12 = arith.constant 0 : index
      %c0_13 = arith.constant 0 : index
      %c0_14 = arith.constant 0 : index
      %20 = vector.load %arg4[%c0_12, %c0_13, %c0_14] : memref<3x8x8xf32, #tpu.memory_space<vmem>>, vector<3x8x8xf32>
      %21 = tpu.iota {dimensions = array<i32: 2>} : vector<1x1x128xi32>
      %c0_i32_15 = arith.constant 0 : i32
      %22 = vector.broadcast %c0_i32_15 : i32 to vector<1x1x128xi32>
      %23 = arith.cmpi sgt, %21, %22 : vector<1x1x128xi32>
      %c1_i32_16 = arith.constant 1 : i32
      %24 = tpu.dynamic_rotate %19 by %c1_i32_16 dim 2 : vector<2x8x128xf32>, i32 -> vector<2x8x128xf32>
      %cst_17 = arith.constant 0.000000e+00 : f32
      %25 = vector.shape_cast %23 : vector<1x1x128xi1> to vector<1x1x128xi1>
      %26 = vector.broadcast %25 : vector<1x1x128xi1> to vector<2x8x128xi1>
      %27 = vector.broadcast %cst_17 : f32 to vector<2x8x128xf32>
      %28 = arith.select %26, %24, %27 : vector<2x8x128xi1>, vector<2x8x128xf32>
      %c127_i32 = arith.constant 127 : i32
      %29 = vector.broadcast %c127_i32 : i32 to vector<1x1x128xi32>
      %30 = arith.cmpi slt, %21, %29 : vector<1x1x128xi32>
      %c127_i32_18 = arith.constant 127 : i32
      %31 = tpu.dynamic_rotate %19 by %c127_i32_18 dim 2 : vector<2x8x128xf32>, i32 -> vector<2x8x128xf32>
      %cst_19 = arith.constant 0.000000e+00 : f32
      %32 = vector.shape_cast %30 : vector<1x1x128xi1> to vector<1x1x128xi1>
      %33 = vector.broadcast %32 : vector<1x1x128xi1> to vector<2x8x128xi1>
      %34 = vector.broadcast %cst_19 : f32 to vector<2x8x128xf32>
      %35 = arith.select %33, %31, %34 : vector<2x8x128xi1>, vector<2x8x128xf32>
      %36 = vector.extract_strided_slice %20 {offsets = [0, 0, 0], sizes = [1, 8, 8], strides = [1, 1, 1]} : vector<3x8x8xf32> to vector<1x8x8xf32>
      %37 = vector.shape_cast %36 : vector<1x8x8xf32> to vector<8x8xf32>
      %38 = vector.shape_cast %37 : vector<8x8xf32> to vector<1x8x8xf32>
      %39 = vector.broadcast %38 : vector<1x8x8xf32> to vector<2x8x8xf32>
      %cst_20 = arith.constant dense<0.000000e+00> : vector<2x8x128xf32>
      %40 = tpu.matmul %39, %28, %cst_20 {dimension_numbers = #tpu.dot_dimension_numbers<[2], [1], [1], [2], [0, 0, 0, 1, 1, 2], [0], [0]>} : vector<2x8x8xf32>, vector<2x8x128xf32>, vector<2x8x128xf32> -> vector<2x8x128xf32>
      %41 = vector.extract_strided_slice %20 {offsets = [1, 0, 0], sizes = [1, 8, 8], strides = [1, 1, 1]} : vector<3x8x8xf32> to vector<1x8x8xf32>
      %42 = vector.shape_cast %41 : vector<1x8x8xf32> to vector<8x8xf32>
      %43 = vector.shape_cast %42 : vector<8x8xf32> to vector<1x8x8xf32>
      %44 = vector.broadcast %43 : vector<1x8x8xf32> to vector<2x8x8xf32>
      %cst_21 = arith.constant dense<0.000000e+00> : vector<2x8x128xf32>
      %45 = tpu.matmul %44, %19, %cst_21 {dimension_numbers = #tpu.dot_dimension_numbers<[2], [1], [1], [2], [0, 0, 0, 1, 1, 2], [0], [0]>} : vector<2x8x8xf32>, vector<2x8x128xf32>, vector<2x8x128xf32> -> vector<2x8x128xf32>
      %46 = arith.addf %40, %45 : vector<2x8x128xf32>
      %47 = vector.extract_strided_slice %20 {offsets = [2, 0, 0], sizes = [1, 8, 8], strides = [1, 1, 1]} : vector<3x8x8xf32> to vector<1x8x8xf32>
      %48 = vector.shape_cast %47 : vector<1x8x8xf32> to vector<8x8xf32>
      %49 = vector.shape_cast %48 : vector<8x8xf32> to vector<1x8x8xf32>
      %50 = vector.broadcast %49 : vector<1x8x8xf32> to vector<2x8x8xf32>
      %cst_22 = arith.constant dense<0.000000e+00> : vector<2x8x128xf32>
      %51 = tpu.matmul %50, %35, %cst_22 {dimension_numbers = #tpu.dot_dimension_numbers<[2], [1], [1], [2], [0, 0, 0, 1, 1, 2], [0], [0]>} : vector<2x8x8xf32>, vector<2x8x128xf32>, vector<2x8x128xf32> -> vector<2x8x128xf32>
      %52 = arith.addf %46, %51 : vector<2x8x128xf32>
      %c0_23 = arith.constant 0 : index
      %c0_24 = arith.constant 0 : index
      %c0_25 = arith.constant 0 : index
      %53 = vector.load %arg7[%c0_23, %c0_24, %c0_25] : memref<2x8x128xf32, #tpu.memory_space<vmem>>, vector<2x8x128xf32>
      tpu.vector_store %arg7[%c0_23, %c0_24, %c0_25], %52 {strides = array<i32>} : memref<2x8x128xf32, #tpu.memory_space<vmem>>, vector<2x8x128xf32>,
      %c0_i32_26 = arith.constant 0 : i32
      %54 = arith.cmpi eq, %arg1, %c0_i32_26 : i32
      %55 = arith.extui %54 : i1 to i32
      %c0_i32_27 = arith.constant 0 : i32
      %56 = arith.cmpi ne, %55, %c0_i32_27 : i32
      scf.if %56 {
        %cst_44 = arith.constant 0.000000e+00 : f32
        %72 = vector.broadcast %cst_44 : f32 to vector<1x8x1xf32>
        %c0_45 = arith.constant 0 : index
        %c0_46 = arith.constant 0 : index
        %c0_47 = arith.constant 0 : index
        %73 = vector.load %arg8[%c0_45, %c0_46, %c0_47] : memref<1x8x1xf32, #tpu.memory_space<vmem>>, vector<1x8x1xf32>
        tpu.vector_store %arg8[%c0_45, %c0_46, %c0_47], %72 {strides = array<i32>} : memref<1x8x1xf32, #tpu.memory_space<vmem>>, vector<1x8x1xf32>,
        %cst_48 = arith.constant 0.000000e+00 : f32
        %74 = vector.broadcast %cst_48 : f32 to vector<1x8x1xf32>
        %c0_49 = arith.constant 0 : index
        %c0_50 = arith.constant 0 : index
        %c0_51 = arith.constant 0 : index
        %75 = vector.load %arg9[%c0_49, %c0_50, %c0_51] : memref<1x8x1xf32, #tpu.memory_space<vmem>>, vector<1x8x1xf32>
        tpu.vector_store %arg9[%c0_49, %c0_50, %c0_51], %74 {strides = array<i32>} : memref<1x8x1xf32, #tpu.memory_space<vmem>>, vector<1x8x1xf32>,
      } else {
      }
      %c0_28 = arith.constant 0 : index
      %c0_29 = arith.constant 0 : index
      %c0_30 = arith.constant 0 : index
      %57 = vector.load %arg8[%c0_28, %c0_29, %c0_30] : memref<1x8x1xf32, #tpu.memory_space<vmem>>, vector<1x8x1xf32>
      %cst_31 = arith.constant dense<0.000000e+00> : vector<2x8xf32>
      %58 = vector.multi_reduction <add>, %52, %cst_31 [2] : vector<2x8x128xf32> to vector<2x8xf32>
      %59 = vector.shape_cast %58 : vector<2x8xf32> to vector<2x8x1xf32>
      %cst_32 = arith.constant dense<0.000000e+00> : vector<8x1xf32>
      %60 = vector.multi_reduction <add>, %59, %cst_32 [0] : vector<2x8x1xf32> to vector<8x1xf32>
      %61 = vector.shape_cast %60 : vector<8x1xf32> to vector<1x8x1xf32>
      %62 = arith.addf %57, %61 : vector<1x8x1xf32>
      %c0_33 = arith.constant 0 : index
      %c0_34 = arith.constant 0 : index
      %c0_35 = arith.constant 0 : index
      %63 = vector.load %arg8[%c0_33, %c0_34, %c0_35] : memref<1x8x1xf32, #tpu.memory_space<vmem>>, vector<1x8x1xf32>
      tpu.vector_store %arg8[%c0_33, %c0_34, %c0_35], %62 {strides = array<i32>} : memref<1x8x1xf32, #tpu.memory_space<vmem>>, vector<1x8x1xf32>,
      %c0_36 = arith.constant 0 : index
      %c0_37 = arith.constant 0 : index
      %c0_38 = arith.constant 0 : index
      %64 = vector.load %arg9[%c0_36, %c0_37, %c0_38] : memref<1x8x1xf32, #tpu.memory_space<vmem>>, vector<1x8x1xf32>
      %65 = arith.mulf %52, %52 : vector<2x8x128xf32>
      %cst_39 = arith.constant dense<0.000000e+00> : vector<2x8xf32>
      %66 = vector.multi_reduction <add>, %65, %cst_39 [2] : vector<2x8x128xf32> to vector<2x8xf32>
      %67 = vector.shape_cast %66 : vector<2x8xf32> to vector<2x8x1xf32>
      %cst_40 = arith.constant dense<0.000000e+00> : vector<8x1xf32>
      %68 = vector.multi_reduction <add>, %67, %cst_40 [0] : vector<2x8x1xf32> to vector<8x1xf32>
      %69 = vector.shape_cast %68 : vector<8x1xf32> to vector<1x8x1xf32>
      %70 = arith.addf %64, %69 : vector<1x8x1xf32>
      %c0_41 = arith.constant 0 : index
      %c0_42 = arith.constant 0 : index
      %c0_43 = arith.constant 0 : index
      %71 = vector.load %arg9[%c0_41, %c0_42, %c0_43] : memref<1x8x1xf32, #tpu.memory_space<vmem>>, vector<1x8x1xf32>
      tpu.vector_store %arg9[%c0_41, %c0_42, %c0_43], %70 {strides = array<i32>} : memref<1x8x1xf32, #tpu.memory_space<vmem>>, vector<1x8x1xf32>,
    } else {
    }
    return
  }
  func.func @transform_0(%arg0: i32, %arg1: i32) -> (i32, i32, i32) {
    %c1_i32 = arith.constant 1 : i32
    %0 = arith.subi %c1_i32, %arg1 : i32
    %1 = arith.muli %arg0, %0 : i32
    %2 = arith.addi %arg1, %1 : i32
    %c0_i32 = arith.constant 0 : i32
    %c0_i32_0 = arith.constant 0 : i32
    %c0_i32_1 = arith.constant 0 : i32
    return %2, %c0_i32, %c0_i32_0 : i32, i32, i32
  }
  func.func @transform_1(%arg0: i32, %arg1: i32) -> (i32, i32, i32) {
    %c0_i32 = arith.constant 0 : i32
    %c0_i32_0 = arith.constant 0 : i32
    %c0_i32_1 = arith.constant 0 : i32
    %c0_i32_2 = arith.constant 0 : i32
    return %c0_i32, %c0_i32_0, %c0_i32_1 : i32, i32, i32
  }
  func.func @transform_2(%arg0: i32, %arg1: i32) -> (i32, i32, i32) {
    %c0_i32 = arith.constant 0 : i32
    %c0_i32_0 = arith.constant 0 : i32
    %c0_i32_1 = arith.constant 0 : i32
    %c0_i32_2 = arith.constant 0 : i32
    return %c0_i32, %c0_i32_0, %c0_i32_1 : i32, i32, i32
  }
  func.func @transform_3(%arg0: i32, %arg1: i32) -> (i32, i32, i32) {
    %c0_i32 = arith.constant 0 : i32
    %c0_i32_0 = arith.constant 0 : i32
    %c0_i32_1 = arith.constant 0 : i32
    %c0_i32_2 = arith.constant 0 : i32
    return %c0_i32, %c0_i32_0, %c0_i32_1 : i32, i32, i32
  }
  func.func @transform_4(%arg0: i32, %arg1: i32) -> (i32, i32, i32) {
    %c0_i32 = arith.constant 0 : i32
    %c0_i32_0 = arith.constant 0 : i32
    %c0_i32_1 = arith.constant 0 : i32
    %c0_i32_2 = arith.constant 0 : i32
    return %c0_i32, %c0_i32_0, %c0_i32_1 : i32, i32, i32
  }
  func.func @transform_5(%arg0: i32, %arg1: i32) -> (i32, i32, i32) {
    %0 = arith.muli %arg1, %arg0 : i32
    %c0_i32 = arith.constant 0 : i32
    %c0_i32_0 = arith.constant 0 : i32
    %c0_i32_1 = arith.constant 0 : i32
    return %0, %c0_i32, %c0_i32_0 : i32, i32, i32
  }
  func.func @transform_6(%arg0: i32, %arg1: i32) -> (i32, i32, i32) {
    %c0_i32 = arith.constant 0 : i32
    %c0_i32_0 = arith.constant 0 : i32
    %c0_i32_1 = arith.constant 0 : i32
    %c0_i32_2 = arith.constant 0 : i32
    return %c0_i32, %c0_i32_0, %c0_i32_1 : i32, i32, i32
  }
  func.func @transform_7(%arg0: i32, %arg1: i32) -> (i32, i32, i32) {
    %c0_i32 = arith.constant 0 : i32
    %c0_i32_0 = arith.constant 0 : i32
    %c0_i32_1 = arith.constant 0 : i32
    %c0_i32_2 = arith.constant 0 : i32
    return %c0_i32, %c0_i32_0, %c0_i32_1 : i32, i32, i32
  }
}

</mosaic_0001>

<llo_original>
// kernel: tpu_custom_call.1
$region0: #{tpu_custom_call.1}
  #allocation0 [shape = 'u32[]', space=smem, size = 0x4, offset = 0x4, fixed_abs, tag = 'smem constant byte address 0x4 - core index']
  #allocation1 [shape = 'u32[144,128]{1,0:T(1,128)}', space=vmem, size = 0x12000, scoped, tag = 'internal scratch']
  #allocation2 [shape = 'f32[2,2,8,128]{3,2,1,0:T(8,128)}', space=vmem, size = 0x4000, scoped, tag = 'scratch operand']
  #allocation3 [shape = 'f32[1,8,1]{2,1,0:T(8,128)}', space=vmem, size = 0x1000, scoped, tag = 'scratch operand']
  #allocation4 [shape = 'f32[1,8,1]{2,1,0:T(8,128)}', space=vmem, size = 0x1000, scoped, tag = 'scratch operand']
  #allocation5 [shape = 'f32[1,8,1]{2,1,0:T(8,128)}', space=vmem, size = 0x1000, scoped, tag = 'scratch operand']
  #allocation6 [shape = 'f32[1,8,1]{2,1,0:T(8,128)}', space=vmem, size = 0x1000, scoped, tag = 'scratch operand']
  %s0 = inlined_call_operand.vmem [shape: f32[4,4,128], index: 0, kind: input, shape index: {}]
  %s1 = inlined_call_operand.vmem [shape: f32[3,8,4], index: 1, kind: input, shape index: {}]
  %s2 = inlined_call_operand.vmem [shape: f32[3,8,8], index: 2, kind: input, shape index: {}]
  %s3 = inlined_call_operand.vmem [shape: f32[1,8,1], index: 3, kind: input, shape index: {}]
  %s4 = inlined_call_operand.vmem [shape: f32[1,8,1], index: 4, kind: input, shape index: {}]
  %s5 = inlined_call_operand.hbm [shape: f32[4,8,128], index: 5, kind: output, shape index: {0}]
  %s6 = inlined_call_operand.vmem [shape: f32[1,8,1], index: 6, kind: output, shape index: {1}]
  %s7 = inlined_call_operand.vmem [shape: f32[1,8,1], index: 7, kind: output, shape index: {2}]
  %8 = xla_tuple %s5, %s6, %s7
  %s9 = sld [smem:[#allocation0]]
  $region89: #{tpu_custom_call.1} parent=0
    _
  %s11 = ssub.s32 1, %s9
  %s12 = scalar_select 0, %s11, %s9
  $region1: #{tpu_custom_call.1} parent=0
    #allocation7 [shape = 'u8[16384]{0}', space=vmem, size = 0x4000, scoped, tag = 'output window, operand 0']
    #allocation8 [shape = 's32[2]{0}', space=sflag, size = 0x8, scoped, tag = 'scoped memory for tpu_custom_call.1']
    %13 = vsyncpa [#allocation8], 0
    %s14 = scalar_lea.sflag [#allocation8], 1
    %15 = vsyncpa %s14, 0
    loop: start=0, step=1, limit=6
    $region2: #{tpu_custom_call.1} parent=1 // loop_pre_header
      _
    $region3: #{tpu_custom_call.1} parent=1 // loop_header
      %s17 = sphi 0, %s21
      %p18 = scmp.ge.s32.totalorder %s17, 6
      %s24 = sphi 0, %s36
      %s25 = sphi 0, %s32
      %s26 = sphi 0, %s24
      %s27 = sphi 0, %s25
      %s28 = sphi 0, %s26
      %s29 = sphi 0, %s27
      %s45 = sphi 0, %s47
      %s48 = sphi 0, %s45
      %s49 = sphi 0, %s48
      %s65 = sphi 0, %s49
      %s69 = sphi 0, %s69
      %s71 = sphi 0, %s69
      %s72 = sphi 0, %s71
      %s86 = sphi 0, %s72
      %s90 = sphi 0, %s90
      %s92 = sphi 0, %s90
      %s93 = sphi 0, %s92
      %s107 = sphi 0, %s93
      %s111 = sphi 0, %s111
      %s113 = sphi 0, %s111
      %s114 = sphi 0, %s113
      %s128 = sphi 0, %s114
      %s132 = sphi 0, %s132
      %s134 = sphi 0, %s132
      %s135 = sphi 0, %s134
      %s149 = sphi 0, %s135
      %s157 = sphi 0, %s159
      %s160 = sphi 0, %s157
      %s161 = sphi 0, %s160
      %s177 = sphi 0, %s161
      %s181 = sphi 0, %s181
      %s183 = sphi 0, %s181
      %s184 = sphi 0, %s183
      %s198 = sphi 0, %s184
      %s202 = sphi 0, %s202
      %s204 = sphi 0, %s202
      %s205 = sphi 0, %s204
      %s219 = sphi 0, %s205
    $region4: #{tpu_custom_call.1} parent=1 // loop_header_branch
      %20 = sbr.rel (%p18) target = $region8
    $region5: #{tpu_custom_call.1} parent=1 // loop_body
      %s22 = ssub.s32 %s17, 1
      %s23 = ssub.s32 %s17, 2
      %s30 = sadd.s32 1, %s25
      %p31 = scmp.ge.s32.totalorder %s30, 2
      %s32 = scalar_select %p31, 0, %s30
      %s33 = sadd.s32 1, %s24
      %s34 = scalar_select %p31, %s33, %s24
      %p35 = scmp.ge.s32.totalorder %s34, 2
      %s36 = scalar_select %p35, 0, %s34
      %s37 = ssub.s32 1, %s25
      %s38 = smul.u32 %s24, %s37
      %s39 = sadd.s32 %s25, %s38
      %s40 = ssub.s32 1, %s32
      %s41 = smul.u32 %s36, %s40
      %s42 = sadd.s32 %s32, %s41
      %s43 = ssub.s32 %s39, %s42
      %p44 = scmp.eq.s32.totalorder %s43, 0
      %s46 = sadd.s32 %s45, 1
      %s47 = scalar_select %p44, %s45, %s46
      %p50 = pneg %p44
      %p51 = scmp.eq.s32.totalorder %s17, 3
      %p52 = por %p50, %p51
      %p53 = scmp.ne.s32.totalorder %s45, %s48
      %p54 = scmp.eq.s32.totalorder %s17, 0
      %p55 = por %p53, %p54
      %p56 = scmp.ne.s32.totalorder %s45, %s48
      %p57 = scmp.eq.s32.totalorder %s22, 3
      %p58 = por %p56, %p57
      %p59 = scmp.ne.s32.totalorder %s48, %s49
      %p60 = scmp.eq.s32.totalorder %s22, 0
      %p61 = por %p59, %p60
      %p62 = scmp.ne.s32.totalorder %s48, %s49
      %p63 = scmp.eq.s32.totalorder %s23, 3
      %p64 = por %p62, %p63
      %p66 = scmp.ne.s32.totalorder %s49, %s65
      %p67 = scmp.eq.s32.totalorder %s23, 0
      %p68 = por %p66, %p67
      %s70 = sadd.s32 %s69, 1
      %p73 = scmp.eq.s32.totalorder %s17, 3
      %p74 = scmp.ne.s32.totalorder %s69, %s71
      %p75 = scmp.eq.s32.totalorder %s17, 0
      %p76 = por %p74, %p75
      %p77 = scmp.ne.s32.totalorder %s69, %s71
      %p78 = scmp.eq.s32.totalorder %s22, 3
      %p79 = por %p77, %p78
      %p80 = scmp.ne.s32.totalorder %s71, %s72
      %p81 = scmp.eq.s32.totalorder %s22, 0
      %p82 = por %p80, %p81
      %p83 = scmp.ne.s32.totalorder %s71, %s72
      %p84 = scmp.eq.s32.totalorder %s23, 3
      %p85 = por %p83, %p84
      %p87 = scmp.ne.s32.totalorder %s72, %s86
      %p88 = scmp.eq.s32.totalorder %s23, 0
      %p89 = por %p87, %p88
      %s91 = sadd.s32 %s90, 1
      %p94 = scmp.eq.s32.totalorder %s17, 3
      %p95 = scmp.ne.s32.totalorder %s90, %s92
      %p96 = scmp.eq.s32.totalorder %s17, 0
      %p97 = por %p95, %p96
      %p98 = scmp.ne.s32.totalorder %s90, %s92
      %p99 = scmp.eq.s32.totalorder %s22, 3
      %p100 = por %p98, %p99
      %p101 = scmp.ne.s32.totalorder %s92, %s93
      %p102 = scmp.eq.s32.totalorder %s22, 0
      %p103 = por %p101, %p102
      %p104 = scmp.ne.s32.totalorder %s92, %s93
      %p105 = scmp.eq.s32.totalorder %s23, 3
      %p106 = por %p104, %p105
      %p108 = scmp.ne.s32.totalorder %s93, %s107
      %p109 = scmp.eq.s32.totalorder %s23, 0
      %p110 = por %p108, %p109
      %s112 = sadd.s32 %s111, 1
      %p115 = scmp.eq.s32.totalorder %s17, 3
      %p116 = scmp.ne.s32.totalorder %s111, %s113
      %p117 = scmp.eq.s32.totalorder %s17, 0
      %p118 = por %p116, %p117
      %p119 = scmp.ne.s32.totalorder %s111, %s113
      %p120 = scmp.eq.s32.totalorder %s22, 3
      %p121 = por %p119, %p120
      %p122 = scmp.ne.s32.totalorder %s113, %s114
      %p123 = scmp.eq.s32.totalorder %s22, 0
      %p124 = por %p122, %p123
      %p125 = scmp.ne.s32.totalorder %s113, %s114
      %p126 = scmp.eq.s32.totalorder %s23, 3
      %p127 = por %p125, %p126
      %p129 = scmp.ne.s32.totalorder %s114, %s128
      %p130 = scmp.eq.s32.totalorder %s23, 0
      %p131 = por %p129, %p130
      %s133 = sadd.s32 %s132, 1
      %p136 = scmp.eq.s32.totalorder %s17, 3
      %p137 = scmp.ne.s32.totalorder %s132, %s134
      %p138 = scmp.eq.s32.totalorder %s17, 0
      %p139 = por %p137, %p138
      %p140 = scmp.ne.s32.totalorder %s132, %s134
      %p141 = scmp.eq.s32.totalorder %s22, 3
      %p142 = por %p140, %p141
      %p143 = scmp.ne.s32.totalorder %s134, %s135
      %p144 = scmp.eq.s32.totalorder %s22, 0
      %p145 = por %p143, %p144
      %p146 = scmp.ne.s32.totalorder %s134, %s135
      %p147 = scmp.eq.s32.totalorder %s23, 3
      %p148 = por %p146, %p147
      %p150 = scmp.ne.s32.totalorder %s135, %s149
      %p151 = scmp.eq.s32.totalorder %s23, 0
      %p152 = por %p150, %p151
      %s153 = smul.u32 %s25, %s24
      %s154 = smul.u32 %s32, %s36
      %s155 = ssub.s32 %s153, %s154
      %p156 = scmp.eq.s32.totalorder %s155, 0
      %s158 = sadd.s32 %s157, 1
      %s159 = scalar_select %p156, %s157, %s158
      %p162 = pneg %p156
      %p163 = scmp.eq.s32.totalorder %s17, 3
      %p164 = por %p162, %p163
      %p165 = scmp.ne.s32.totalorder %s157, %s160
      %p166 = scmp.eq.s32.totalorder %s17, 0
      %p167 = por %p165, %p166
      %p168 = scmp.ne.s32.totalorder %s157, %s160
      %p169 = scmp.eq.s32.totalorder %s22, 3
      %p170 = por %p168, %p169
      %p171 = scmp.ne.s32.totalorder %s160, %s161
      %p172 = scmp.eq.s32.totalorder %s22, 0
      %p173 = por %p171, %p172
      %p174 = scmp.ne.s32.totalorder %s160, %s161
      %p175 = scmp.eq.s32.totalorder %s23, 3
      %p176 = por %p174, %p175
      %p178 = scmp.ne.s32.totalorder %s161, %s177
      %p179 = scmp.eq.s32.totalorder %s23, 0
      %p180 = por %p178, %p179
      %s182 = sadd.s32 %s181, 1
      %p185 = scmp.eq.s32.totalorder %s17, 3
      %p186 = scmp.ne.s32.totalorder %s181, %s183
      %p187 = scmp.eq.s32.totalorder %s17, 0
      %p188 = por %p186, %p187
      %p189 = scmp.ne.s32.totalorder %s181, %s183
      %p190 = scmp.eq.s32.totalorder %s22, 3
      %p191 = por %p189, %p190
      %p192 = scmp.ne.s32.totalorder %s183, %s184
      %p193 = scmp.eq.s32.totalorder %s22, 0
      %p194 = por %p192, %p193
      %p195 = scmp.ne.s32.totalorder %s183, %s184
      %p196 = scmp.eq.s32.totalorder %s23, 3
      %p197 = por %p195, %p196
      %p199 = scmp.ne.s32.totalorder %s184, %s198
      %p200 = scmp.eq.s32.totalorder %s23, 0
      %p201 = por %p199, %p200
      %s203 = sadd.s32 %s202, 1
      %p206 = scmp.eq.s32.totalorder %s17, 3
      %p207 = scmp.ne.s32.totalorder %s202, %s204
      %p208 = scmp.eq.s32.totalorder %s17, 0
      %p209 = por %p207, %p208
      %p210 = scmp.ne.s32.totalorder %s202, %s204
      %p211 = scmp.eq.s32.totalorder %s22, 3
      %p212 = por %p210, %p211
      %p213 = scmp.ne.s32.totalorder %s204, %s205
      %p214 = scmp.eq.s32.totalorder %s22, 0
      %p215 = por %p213, %p214
      %p216 = scmp.ne.s32.totalorder %s204, %s205
      %p217 = scmp.eq.s32.totalorder %s23, 3
      %p218 = por %p216, %p217
      %p220 = scmp.ne.s32.totalorder %s205, %s219
      %p221 = scmp.eq.s32.totalorder %s23, 0
      %p222 = por %p220, %p221
      %p223 = scmp.le.s32.totalorder 1, %s17
      %p224 = scmp.lt.s32.totalorder %s17, 5
      %p225 = pnand %p223, %p224
      %p226 = pneg %p225
      // Predicated region
      $region9: #{tpu_custom_call.1} parent=5 // pred_check
        _
      $region10: #{tpu_custom_call.1} parent=5 // pred_check_branch
        %228 = sbr.rel (%p225) target = $region12
      $region11: #{tpu_custom_call.1} parent=5 // pred_region
        %s229 = ssub.s32 %s17, 1
        // Predicated region
        $region13: #{tpu_custom_call.1} parent=11 // pred_check
          %p230 = pneg %p82
        $region14: #{tpu_custom_call.1} parent=11 // pred_check_branch
          %232 = sbr.rel (%p230) target = $region16
        $region15: #{tpu_custom_call.1} parent=11 // pred_region
          _
        $region16: #{tpu_custom_call.1} parent=11 // pred_fallthru
          _
        // Predicated region
        $region17: #{tpu_custom_call.1} parent=11 // pred_check
          %p233 = pneg %p103
        $region18: #{tpu_custom_call.1} parent=11 // pred_check_branch
          %235 = sbr.rel (%p233) target = $region20
        $region19: #{tpu_custom_call.1} parent=11 // pred_region
          _
        $region20: #{tpu_custom_call.1} parent=11 // pred_fallthru
          _
        // Predicated region
        $region21: #{tpu_custom_call.1} parent=11 // pred_check
          %p236 = pneg %p124
        $region22: #{tpu_custom_call.1} parent=11 // pred_check_branch
          %238 = sbr.rel (%p236) target = $region24
        $region23: #{tpu_custom_call.1} parent=11 // pred_region
          _
        $region24: #{tpu_custom_call.1} parent=11 // pred_fallthru
          _
        // Predicated region
        $region25: #{tpu_custom_call.1} parent=11 // pred_check
          %p239 = pneg %p145
        $region26: #{tpu_custom_call.1} parent=11 // pred_check_branch
          %241 = sbr.rel (%p239) target = $region28
        $region27: #{tpu_custom_call.1} parent=11 // pred_region
          _
        $region28: #{tpu_custom_call.1} parent=11 // pred_fallthru
          _
      $region12: #{tpu_custom_call.1} parent=5 // pred_fallthru
        _
      %p242 = scmp.lt.s32.totalorder %s17, 4
      // Predicated region
      $region29: #{tpu_custom_call.1} parent=5 // pred_check
        %p243 = pneg %p242
      $region30: #{tpu_custom_call.1} parent=5 // pred_check_branch
        %245 = sbr.rel (%p243) target = $region32
      $region31: #{tpu_custom_call.1} parent=5 // pred_region
        // Predicated region
        $region33: #{tpu_custom_call.1} parent=31 // pred_check
          %p246 = pneg %p55
        $region34: #{tpu_custom_call.1} parent=31 // pred_check_branch
          %248 = sbr.rel (%p246) target = $region36
        $region35: #{tpu_custom_call.1} parent=31 // pred_region
          %s249 = ssub.s32 1, %s25
          %s250 = smul.u32 %s24, %s249
          %s251 = sadd.s32 %s25, %s250
          %s252 = smul.u32 2, %s251
          %p253 = scmp.lt.s32.totalorder %s252, 3
          %s254 = scalar_select %p253, %s252, 3
          %s255 = smul.addr %s254, 4
          %s256 = scalar_lea.vmem %s0, %s255
          %s257 = ssub.s32 1, %s25
          %s258 = smul.u32 %s24, %s257
          %s259 = sadd.s32 %s25, %s258
          %s260 = smul.u32 2, %s259
        $region36: #{tpu_custom_call.1} parent=31 // pred_fallthru
          _
      $region32: #{tpu_custom_call.1} parent=5 // pred_fallthru
        _
      %p261 = scmp.le.s32.totalorder 1, %s17
      %p262 = scmp.lt.s32.totalorder %s17, 5
      %p263 = pnand %p261, %p262
      %p264 = pneg %p263
      // Predicated region
      $region37: #{tpu_custom_call.1} parent=5 // pred_check
        _
      $region38: #{tpu_custom_call.1} parent=5 // pred_check_branch
        %266 = sbr.rel (%p263) target = $region40
      $region39: #{tpu_custom_call.1} parent=5 // pred_region
        %s267 = ssub.s32 %s17, 1
        %s268 = ssub.s32 1, %s27
        %s269 = smul.u32 %s26, %s268
        %s270 = sadd.s32 %s27, %s269
        %s271 = smul.u32 2, %s270
        %p272 = scmp.lt.s32.totalorder %s271, 3
        %s273 = scalar_select %p272, %s271, 3
        %s274 = smul.addr %s273, 4
        %s275 = scalar_lea.vmem %s0, %s274
        %p276 = pneg %p61
        %p277 = pneg %p58
        %p278 = pneg %p82
        %p279 = pneg %p79
        %p280 = pneg %p103
        %p281 = pneg %p100
        %p282 = pneg %p124
        %p283 = pneg %p121
        %p284 = pneg %p145
        %p285 = pneg %p142
        %p286 = pneg %p173
        %p287 = pneg %p170
        %s288 = sand.u32 %s160, 1
        %s289 = scalar_lea.sflag [#allocation8], %s288
        %s290 = sand.u32 %s160, 1
        %s291 = smul.addr %s290, 16
        %s292 = scalar_lea.vmem [#allocation7], %s291
        %p293 = pneg %p194
        %p294 = pneg %p191
        %p295 = pneg %p215
        %p296 = pneg %p212
        %s297 = ssub.s32 1, %s27
        %s298 = smul.u32 %s26, %s297
        %s299 = sadd.s32 %s27, %s298
        %s300 = smul.u32 2, %s299
        %p301 = scmp.lt.s32.totalorder %s300, 3
        %s302 = scalar_select %p301, %s300, 3
        %s303 = smul.addr %s302, 4
        %s304 = scalar_lea.vmem %s0, %s303
        %s305 = ssub.s32 1, %s27
        %s306 = smul.u32 %s26, %s305
        %s307 = sadd.s32 %s27, %s306
        %s308 = smul.u32 2, %s307
        %s309 = smul.u32 %s27, %s26
        %s310 = smul.u32 2, %s309
        %p311 = scmp.eq.s32.totalorder %s26, 0
        // Predicated region
        $region41: #{tpu_custom_call.1} parent=39 // pred_check
          %p312 = pneg %p311
        $region42: #{tpu_custom_call.1} parent=39 // pred_check_branch
          %314 = sbr.rel (%p312) target = $region44
        $region43: #{tpu_custom_call.1} parent=39 // pred_region
          %v315 = vld [vmem:[%s304] sm:$0xf]
          %v316 = vld [vmem:[%s304 + $0x4] sm:$0xf]
          %v317 = vld [vmem:[%s1] sm:$0xff]
          %v318 = vld [vmem:[%s1 + $0x8] sm:$0xff]
          %v319 = vld [vmem:[%s1 + $0x10] sm:$0xff]
          %v320 = vlaneseq
          %v321 = vand.u32 %v320, 127
          %vm322 = vcmp.gt.s32.totalorder %v321, 0
          %323 = vrot.lane.b32.xlu0 %v315, 1
          %v324 = vpop.permute.xlu0 %323
          %325 = vrot.lane.b32.xlu0 %v316, 1
          %v326 = vpop.permute.xlu0 %325
          %v327 = vsel %vm322, 1, 0
          %vm328 = vcmp.eq.s32.totalorder %v327, 1
          %v329 = vsel %vm328, %v324, 0.0
          %v330 = vsel %vm328, %v326, 0.0
          %vm331 = vcmp.lt.s32.totalorder %v321, 127
          %332 = vrot.lane.b32.xlu0 %v315, 127
          %v333 = vpop.permute.xlu0 %332
          %334 = vrot.lane.b32.xlu0 %v316, 127
          %v335 = vpop.permute.xlu0 %334
          %v336 = vsel %vm331, 1, 0
          %vm337 = vcmp.eq.s32.totalorder %v336, 1
          %v338 = vsel %vm337, %v333, 0.0
          %v339 = vsel %vm337, %v335, 0.0
          %vm340 = vcmask 31744
          %v342 = vsel %vm340, %v318, 0
          %vm344 = vcmask 1043456
          %v346 = vsel %vm344, %v315, 0
          %348 = vmatprep.subr.mxu0 0.0
          %349 = vmatpush1.msra.mxu0 %v346
          %350 = vmatprep.subr.mxu0 0.0
          %351 = vmatpush1.msra.mxu0 0.0
          %352 = vmatprep.subr.mxu0 0.0
          %353 = vmatpush1.msra.mxu0 0.0
          %354 = vmatprep.subr.mxu0 0.0
          %355 = vmatpush1.msra.mxu0 0.0
          %356 = vmatprep.subr.mxu0 0.0
          %357 = vmatpush1.msra.mxu0 0.0
          %358 = vmatprep.subr.mxu0 0.0
          %359 = vmatpush1.msra.mxu0 0.0
          %360 = vmatprep.subr.mxu0 0.0
          %361 = vmatpush1.msra.mxu0 0.0
          %362 = vmatprep.subr.mxu0 0.0
          %363 = vmatpush1.msra.mxu0 0.0
          %364 = vmatprep.subr.mxu0 0.0
          %365 = vmatpush1.msra.mxu0 0.0
          %366 = vmatprep.subr.mxu0 0.0
          %367 = vmatpush1.msra.mxu0 0.0
          %368 = vmatprep.subr.mxu0 0.0
          %369 = vmatpush1.msra.mxu0 0.0
          %370 = vmatprep.subr.mxu0 0.0
          %371 = vmatpush1.msra.mxu0 0.0
          %372 = vmatprep.subr.mxu0 0.0
          %373 = vmatpush1.msra.mxu0 0.0
          %374 = vmatprep.subr.mxu0 0.0
          %375 = vmatpush1.msra.mxu0 0.0
          %376 = vmatprep.subr.mxu0 0.0
          %377 = vmatpush1.msra.mxu0 0.0
          %378 = vmatprep.subr.mxu0 0.0
          %379 = vmatpush1.msra.mxu0 0.0
          %380 = vmatprep.subr.mxu0 0.0
          %381 = vmatpush1.msra.mxu0 0.0
          %382 = vmatprep.subr.mxu0 0.0
          %383 = vmatpush1.msra.mxu0 0.0
          %384 = vmatprep.subr.mxu0 0.0
          %385 = vmatpush1.msra.mxu0 0.0
          %386 = vmatprep.subr.mxu0 0.0
          %387 = vmatpush1.msra.mxu0 0.0
          %388 = vmatprep.subr.mxu0 0.0
          %389 = vmatpush1.msra.mxu0 0.0
          %390 = vmatprep.subr.mxu0 0.0
          %391 = vmatpush1.msra.mxu0 0.0
          %392 = vmatprep.subr.mxu0 0.0
          %393 = vmatpush1.msra.mxu0 0.0
          %394 = vmatprep.subr.mxu0 0.0
          %395 = vmatpush1.msra.mxu0 0.0
          %396 = vmatprep.subr.mxu0 0.0
          %397 = vmatpush1.msra.mxu0 0.0
          %398 = vmatprep.subr.mxu0 0.0
          %399 = vmatpush1.msra.mxu0 0.0
          %400 = vmatprep.subr.mxu0 0.0
          %401 = vmatpush1.msra.mxu0 0.0
          %402 = vmatprep.subr.mxu0 0.0
          %403 = vmatpush1.msra.mxu0 0.0
          %404 = vmatprep.subr.mxu0 0.0
          %405 = vmatpush1.msra.mxu0 0.0
          %406 = vmatprep.subr.mxu0 0.0
          %407 = vmatpush1.msra.mxu0 0.0
          %408 = vmatprep.subr.mxu0 0.0
          %409 = vmatpush1.msra.mxu0 0.0
          %410 = vmatprep.subr.mxu0 0.0
          %411 = vmatpush1.msra.mxu0 0.0
          %412 = vmatprep.mubr.f32.mxu0 0.0
          %413 = vmatmul.mubr.f32.gmra.mrb[0].mxu0 %v342
          %v414 = vpop.f32.mrb[0].mxu0
          %v415 = vadd.f32 0.0, %v414
          %v416 = vpop.f32.mrb[0].mxu0
          %417 = vdwg.mxu0
          %v419 = vsel %vm344, %v316, 0
          %421 = vmatprep.subr.mxu0 0.0
          %422 = vmatpush1.msra.mxu0 %v419
          %423 = vmatprep.subr.mxu0 0.0
          %424 = vmatpush1.msra.mxu0 0.0
          %425 = vmatprep.subr.mxu0 0.0
          %426 = vmatpush1.msra.mxu0 0.0
          %427 = vmatprep.subr.mxu0 0.0
          %428 = vmatpush1.msra.mxu0 0.0
          %429 = vmatprep.subr.mxu0 0.0
          %430 = vmatpush1.msra.mxu0 0.0
          %431 = vmatprep.subr.mxu0 0.0
          %432 = vmatpush1.msra.mxu0 0.0
          %433 = vmatprep.subr.mxu0 0.0
          %434 = vmatpush1.msra.mxu0 0.0
          %435 = vmatprep.subr.mxu0 0.0
          %436 = vmatpush1.msra.mxu0 0.0
          %437 = vmatprep.subr.mxu0 0.0
          %438 = vmatpush1.msra.mxu0 0.0
          %439 = vmatprep.subr.mxu0 0.0
          %440 = vmatpush1.msra.mxu0 0.0
          %441 = vmatprep.subr.mxu0 0.0
          %442 = vmatpush1.msra.mxu0 0.0
          %443 = vmatprep.subr.mxu0 0.0
          %444 = vmatpush1.msra.mxu0 0.0
          %445 = vmatprep.subr.mxu0 0.0
          %446 = vmatpush1.msra.mxu0 0.0
          %447 = vmatprep.subr.mxu0 0.0
          %448 = vmatpush1.msra.mxu0 0.0
          %449 = vmatprep.subr.mxu0 0.0
          %450 = vmatpush1.msra.mxu0 0.0
          %451 = vmatprep.subr.mxu0 0.0
          %452 = vmatpush1.msra.mxu0 0.0
          %453 = vmatprep.subr.mxu0 0.0
          %454 = vmatpush1.msra.mxu0 0.0
          %455 = vmatprep.subr.mxu0 0.0
          %456 = vmatpush1.msra.mxu0 0.0
          %457 = vmatprep.subr.mxu0 0.0
          %458 = vmatpush1.msra.mxu0 0.0
          %459 = vmatprep.subr.mxu0 0.0
          %460 = vmatpush1.msra.mxu0 0.0
          %461 = vmatprep.subr.mxu0 0.0
          %462 = vmatpush1.msra.mxu0 0.0
          %463 = vmatprep.subr.mxu0 0.0
          %464 = vmatpush1.msra.mxu0 0.0
          %465 = vmatprep.subr.mxu0 0.0
          %466 = vmatpush1.msra.mxu0 0.0
          %467 = vmatprep.subr.mxu0 0.0
          %468 = vmatpush1.msra.mxu0 0.0
          %469 = vmatprep.subr.mxu0 0.0
          %470 = vmatpush1.msra.mxu0 0.0
          %471 = vmatprep.subr.mxu0 0.0
          %472 = vmatpush1.msra.mxu0 0.0
          %473 = vmatprep.subr.mxu0 0.0
          %474 = vmatpush1.msra.mxu0 0.0
          %475 = vmatprep.subr.mxu0 0.0
          %476 = vmatpush1.msra.mxu0 0.0
          %477 = vmatprep.subr.mxu0 0.0
          %478 = vmatpush1.msra.mxu0 0.0
          %479 = vmatprep.subr.mxu0 0.0
          %480 = vmatpush1.msra.mxu0 0.0
          %481 = vmatprep.subr.mxu0 0.0
          %482 = vmatpush1.msra.mxu0 0.0
          %483 = vmatprep.subr.mxu0 0.0
          %484 = vmatpush1.msra.mxu0 0.0
          %485 = vmatprep.mubr.f32.mxu0 0.0
          %486 = vmatmul.mubr.f32.gmra.mrb[0].mxu0 %v342
          %v487 = vpop.f32.mrb[0].mxu0
          %v488 = vadd.f32 0.0, %v487
          %v489 = vpop.f32.mrb[0].mxu0
          %490 = vdwg.mxu0
          %v492 = vsel %vm340, %v317, 0
          %v495 = vsel %vm344, %v329, 0
          %497 = vmatprep.subr.mxu0 0.0
          %498 = vmatpush1.msra.mxu0 %v495
          %499 = vmatprep.subr.mxu0 0.0
          %500 = vmatpush1.msra.mxu0 0.0
          %501 = vmatprep.subr.mxu0 0.0
          %502 = vmatpush1.msra.mxu0 0.0
          %503 = vmatprep.subr.mxu0 0.0
          %504 = vmatpush1.msra.mxu0 0.0
          %505 = vmatprep.subr.mxu0 0.0
          %506 = vmatpush1.msra.mxu0 0.0
          %507 = vmatprep.subr.mxu0 0.0
          %508 = vmatpush1.msra.mxu0 0.0
          %509 = vmatprep.subr.mxu0 0.0
          %510 = vmatpush1.msra.mxu0 0.0
          %511 = vmatprep.subr.mxu0 0.0
          %512 = vmatpush1.msra.mxu0 0.0
          %513 = vmatprep.subr.mxu0 0.0
          %514 = vmatpush1.msra.mxu0 0.0
          %515 = vmatprep.subr.mxu0 0.0
          %516 = vmatpush1.msra.mxu0 0.0
          %517 = vmatprep.subr.mxu0 0.0
          %518 = vmatpush1.msra.mxu0 0.0
          %519 = vmatprep.subr.mxu0 0.0
          %520 = vmatpush1.msra.mxu0 0.0
          %521 = vmatprep.subr.mxu0 0.0
          %522 = vmatpush1.msra.mxu0 0.0
          %523 = vmatprep.subr.mxu0 0.0
          %524 = vmatpush1.msra.mxu0 0.0
          %525 = vmatprep.subr.mxu0 0.0
          %526 = vmatpush1.msra.mxu0 0.0
          %527 = vmatprep.subr.mxu0 0.0
          %528 = vmatpush1.msra.mxu0 0.0
          %529 = vmatprep.subr.mxu0 0.0
          %530 = vmatpush1.msra.mxu0 0.0
          %531 = vmatprep.subr.mxu0 0.0
          %532 = vmatpush1.msra.mxu0 0.0
          %533 = vmatprep.subr.mxu0 0.0
          %534 = vmatpush1.msra.mxu0 0.0
          %535 = vmatprep.subr.mxu0 0.0
          %536 = vmatpush1.msra.mxu0 0.0
          %537 = vmatprep.subr.mxu0 0.0
          %538 = vmatpush1.msra.mxu0 0.0
          %539 = vmatprep.subr.mxu0 0.0
          %540 = vmatpush1.msra.mxu0 0.0
          %541 = vmatprep.subr.mxu0 0.0
          %542 = vmatpush1.msra.mxu0 0.0
          %543 = vmatprep.subr.mxu0 0.0
          %544 = vmatpush1.msra.mxu0 0.0
          %545 = vmatprep.subr.mxu0 0.0
          %546 = vmatpush1.msra.mxu0 0.0
          %547 = vmatprep.subr.mxu0 0.0
          %548 = vmatpush1.msra.mxu0 0.0
          %549 = vmatprep.subr.mxu0 0.0
          %550 = vmatpush1.msra.mxu0 0.0
          %551 = vmatprep.subr.mxu0 0.0
          %552 = vmatpush1.msra.mxu0 0.0
          %553 = vmatprep.subr.mxu0 0.0
          %554 = vmatpush1.msra.mxu0 0.0
          %555 = vmatprep.subr.mxu0 0.0
          %556 = vmatpush1.msra.mxu0 0.0
          %557 = vmatprep.subr.mxu0 0.0
          %558 = vmatpush1.msra.mxu0 0.0
          %559 = vmatprep.subr.mxu0 0.0
          %560 = vmatpush1.msra.mxu0 0.0
          %561 = vmatprep.mubr.f32.mxu0 0.0
          %562 = vmatmul.mubr.f32.gmra.mrb[0].mxu0 %v492
          %v563 = vpop.f32.mrb[0].mxu0
          %v564 = vadd.f32 %v415, %v563
          %v565 = vpop.f32.mrb[0].mxu0
          %566 = vdwg.mxu0
          %v568 = vsel %vm344, %v330, 0
          %570 = vmatprep.subr.mxu0 0.0
          %571 = vmatpush1.msra.mxu0 %v568
          %572 = vmatprep.subr.mxu0 0.0
          %573 = vmatpush1.msra.mxu0 0.0
          %574 = vmatprep.subr.mxu0 0.0
          %575 = vmatpush1.msra.mxu0 0.0
          %576 = vmatprep.subr.mxu0 0.0
          %577 = vmatpush1.msra.mxu0 0.0
          %578 = vmatprep.subr.mxu0 0.0
          %579 = vmatpush1.msra.mxu0 0.0
          %580 = vmatprep.subr.mxu0 0.0
          %581 = vmatpush1.msra.mxu0 0.0
          %582 = vmatprep.subr.mxu0 0.0
          %583 = vmatpush1.msra.mxu0 0.0
          %584 = vmatprep.subr.mxu0 0.0
          %585 = vmatpush1.msra.mxu0 0.0
          %586 = vmatprep.subr.mxu0 0.0
          %587 = vmatpush1.msra.mxu0 0.0
          %588 = vmatprep.subr.mxu0 0.0
          %589 = vmatpush1.msra.mxu0 0.0
          %590 = vmatprep.subr.mxu0 0.0
          %591 = vmatpush1.msra.mxu0 0.0
          %592 = vmatprep.subr.mxu0 0.0
          %593 = vmatpush1.msra.mxu0 0.0
          %594 = vmatprep.subr.mxu0 0.0
          %595 = vmatpush1.msra.mxu0 0.0
          %596 = vmatprep.subr.mxu0 0.0
          %597 = vmatpush1.msra.mxu0 0.0
          %598 = vmatprep.subr.mxu0 0.0
          %599 = vmatpush1.msra.mxu0 0.0
          %600 = vmatprep.subr.mxu0 0.0
          %601 = vmatpush1.msra.mxu0 0.0
          %602 = vmatprep.subr.mxu0 0.0
          %603 = vmatpush1.msra.mxu0 0.0
          %604 = vmatprep.subr.mxu0 0.0
          %605 = vmatpush1.msra.mxu0 0.0
          %606 = vmatprep.subr.mxu0 0.0
          %607 = vmatpush1.msra.mxu0 0.0
          %608 = vmatprep.subr.mxu0 0.0
          %609 = vmatpush1.msra.mxu0 0.0
          %610 = vmatprep.subr.mxu0 0.0
          %611 = vmatpush1.msra.mxu0 0.0
          %612 = vmatprep.subr.mxu0 0.0
          %613 = vmatpush1.msra.mxu0 0.0
          %614 = vmatprep.subr.mxu0 0.0
          %615 = vmatpush1.msra.mxu0 0.0
          %616 = vmatprep.subr.mxu0 0.0
          %617 = vmatpush1.msra.mxu0 0.0
          %618 = vmatprep.subr.mxu0 0.0
          %619 = vmatpush1.msra.mxu0 0.0
          %620 = vmatprep.subr.mxu0 0.0
          %621 = vmatpush1.msra.mxu0 0.0
          %622 = vmatprep.subr.mxu0 0.0
          %623 = vmatpush1.msra.mxu0 0.0
          %624 = vmatprep.subr.mxu0 0.0
          %625 = vmatpush1.msra.mxu0 0.0
          %626 = vmatprep.subr.mxu0 0.0
          %627 = vmatpush1.msra.mxu0 0.0
          %628 = vmatprep.subr.mxu0 0.0
          %629 = vmatpush1.msra.mxu0 0.0
          %630 = vmatprep.subr.mxu0 0.0
          %631 = vmatpush1.msra.mxu0 0.0
          %632 = vmatprep.subr.mxu0 0.0
          %633 = vmatpush1.msra.mxu0 0.0
          %634 = vmatprep.mubr.f32.mxu0 0.0
          %635 = vmatmul.mubr.f32.gmra.mrb[0].mxu0 %v492
          %v636 = vpop.f32.mrb[0].mxu0
          %v637 = vadd.f32 %v488, %v636
          %v638 = vpop.f32.mrb[0].mxu0
          %639 = vdwg.mxu0
          %v641 = vsel %vm340, %v319, 0
          %v644 = vsel %vm344, %v338, 0
          %646 = vmatprep.subr.mxu0 0.0
          %647 = vmatpush1.msra.mxu0 %v644
          %648 = vmatprep.subr.mxu0 0.0
          %649 = vmatpush1.msra.mxu0 0.0
          %650 = vmatprep.subr.mxu0 0.0
          %651 = vmatpush1.msra.mxu0 0.0
          %652 = vmatprep.subr.mxu0 0.0
          %653 = vmatpush1.msra.mxu0 0.0
          %654 = vmatprep.subr.mxu0 0.0
          %655 = vmatpush1.msra.mxu0 0.0
          %656 = vmatprep.subr.mxu0 0.0
          %657 = vmatpush1.msra.mxu0 0.0
          %658 = vmatprep.subr.mxu0 0.0
          %659 = vmatpush1.msra.mxu0 0.0
          %660 = vmatprep.subr.mxu0 0.0
          %661 = vmatpush1.msra.mxu0 0.0
          %662 = vmatprep.subr.mxu0 0.0
          %663 = vmatpush1.msra.mxu0 0.0
          %664 = vmatprep.subr.mxu0 0.0
          %665 = vmatpush1.msra.mxu0 0.0
          %666 = vmatprep.subr.mxu0 0.0
          %667 = vmatpush1.msra.mxu0 0.0
          %668 = vmatprep.subr.mxu0 0.0
          %669 = vmatpush1.msra.mxu0 0.0
          %670 = vmatprep.subr.mxu0 0.0
          %671 = vmatpush1.msra.mxu0 0.0
          %672 = vmatprep.subr.mxu0 0.0
          %673 = vmatpush1.msra.mxu0 0.0
          %674 = vmatprep.subr.mxu0 0.0
          %675 = vmatpush1.msra.mxu0 0.0
          %676 = vmatprep.subr.mxu0 0.0
          %677 = vmatpush1.msra.mxu0 0.0
          %678 = vmatprep.subr.mxu0 0.0
          %679 = vmatpush1.msra.mxu0 0.0
          %680 = vmatprep.subr.mxu0 0.0
          %681 = vmatpush1.msra.mxu0 0.0
          %682 = vmatprep.subr.mxu0 0.0
          %683 = vmatpush1.msra.mxu0 0.0
          %684 = vmatprep.subr.mxu0 0.0
          %685 = vmatpush1.msra.mxu0 0.0
          %686 = vmatprep.subr.mxu0 0.0
          %687 = vmatpush1.msra.mxu0 0.0
          %688 = vmatprep.subr.mxu0 0.0
          %689 = vmatpush1.msra.mxu0 0.0
          %690 = vmatprep.subr.mxu0 0.0
          %691 = vmatpush1.msra.mxu0 0.0
          %692 = vmatprep.subr.mxu0 0.0
          %693 = vmatpush1.msra.mxu0 0.0
          %694 = vmatprep.subr.mxu0 0.0
          %695 = vmatpush1.msra.mxu0 0.0
          %696 = vmatprep.subr.mxu0 0.0
          %697 = vmatpush1.msra.mxu0 0.0
          %698 = vmatprep.subr.mxu0 0.0
          %699 = vmatpush1.msra.mxu0 0.0
          %700 = vmatprep.subr.mxu0 0.0
          %701 = vmatpush1.msra.mxu0 0.0
          %702 = vmatprep.subr.mxu0 0.0
          %703 = vmatpush1.msra.mxu0 0.0
          %704 = vmatprep.subr.mxu0 0.0
          %705 = vmatpush1.msra.mxu0 0.0
          %706 = vmatprep.subr.mxu0 0.0
          %707 = vmatpush1.msra.mxu0 0.0
          %708 = vmatprep.subr.mxu0 0.0
          %709 = vmatpush1.msra.mxu0 0.0
          %710 = vmatprep.mubr.f32.mxu0 0.0
          %711 = vmatmul.mubr.f32.gmra.mrb[0].mxu0 %v641
          %v712 = vpop.f32.mrb[0].mxu0
          %v713 = vadd.f32 0.0, %v712
          %v714 = vpop.f32.mrb[0].mxu0
          %715 = vdwg.mxu0
          %v717 = vsel %vm344, %v339, 0
          %719 = vmatprep.subr.mxu0 0.0
          %720 = vmatpush1.msra.mxu0 %v717
          %721 = vmatprep.subr.mxu0 0.0
          %722 = vmatpush1.msra.mxu0 0.0
          %723 = vmatprep.subr.mxu0 0.0
          %724 = vmatpush1.msra.mxu0 0.0
          %725 = vmatprep.subr.mxu0 0.0
          %726 = vmatpush1.msra.mxu0 0.0
          %727 = vmatprep.subr.mxu0 0.0
          %728 = vmatpush1.msra.mxu0 0.0
          %729 = vmatprep.subr.mxu0 0.0
          %730 = vmatpush1.msra.mxu0 0.0
          %731 = vmatprep.subr.mxu0 0.0
          %732 = vmatpush1.msra.mxu0 0.0
          %733 = vmatprep.subr.mxu0 0.0
          %734 = vmatpush1.msra.mxu0 0.0
          %735 = vmatprep.subr.mxu0 0.0
          %736 = vmatpush1.msra.mxu0 0.0
          %737 = vmatprep.subr.mxu0 0.0
          %738 = vmatpush1.msra.mxu0 0.0
          %739 = vmatprep.subr.mxu0 0.0
          %740 = vmatpush1.msra.mxu0 0.0
          %741 = vmatprep.subr.mxu0 0.0
          %742 = vmatpush1.msra.mxu0 0.0
          %743 = vmatprep.subr.mxu0 0.0
          %744 = vmatpush1.msra.mxu0 0.0
          %745 = vmatprep.subr.mxu0 0.0
          %746 = vmatpush1.msra.mxu0 0.0
          %747 = vmatprep.subr.mxu0 0.0
          %748 = vmatpush1.msra.mxu0 0.0
          %749 = vmatprep.subr.mxu0 0.0
          %750 = vmatpush1.msra.mxu0 0.0
          %751 = vmatprep.subr.mxu0 0.0
          %752 = vmatpush1.msra.mxu0 0.0
          %753 = vmatprep.subr.mxu0 0.0
          %754 = vmatpush1.msra.mxu0 0.0
          %755 = vmatprep.subr.mxu0 0.0
          %756 = vmatpush1.msra.mxu0 0.0
          %757 = vmatprep.subr.mxu0 0.0
          %758 = vmatpush1.msra.mxu0 0.0
          %759 = vmatprep.subr.mxu0 0.0
          %760 = vmatpush1.msra.mxu0 0.0
          %761 = vmatprep.subr.mxu0 0.0
          %762 = vmatpush1.msra.mxu0 0.0
          %763 = vmatprep.subr.mxu0 0.0
          %764 = vmatpush1.msra.mxu0 0.0
          %765 = vmatprep.subr.mxu0 0.0
          %766 = vmatpush1.msra.mxu0 0.0
          %767 = vmatprep.subr.mxu0 0.0
          %768 = vmatpush1.msra.mxu0 0.0
          %769 = vmatprep.subr.mxu0 0.0
          %770 = vmatpush1.msra.mxu0 0.0
          %771 = vmatprep.subr.mxu0 0.0
          %772 = vmatpush1.msra.mxu0 0.0
          %773 = vmatprep.subr.mxu0 0.0
          %774 = vmatpush1.msra.mxu0 0.0
          %775 = vmatprep.subr.mxu0 0.0
          %776 = vmatpush1.msra.mxu0 0.0
          %777 = vmatprep.subr.mxu0 0.0
          %778 = vmatpush1.msra.mxu0 0.0
          %779 = vmatprep.subr.mxu0 0.0
          %780 = vmatpush1.msra.mxu0 0.0
          %781 = vmatprep.subr.mxu0 0.0
          %782 = vmatpush1.msra.mxu0 0.0
          %783 = vmatprep.mubr.f32.mxu0 0.0
          %784 = vmatmul.mubr.f32.gmra.mrb[0].mxu0 %v641
          %v785 = vpop.f32.mrb[0].mxu0
          %v786 = vadd.f32 0.0, %v785
          %v787 = vpop.f32.mrb[0].mxu0
          %788 = vdwg.mxu0
          %v789 = vadd.f32 %v564, %v713
          %v790 = vadd.f32 %v637, %v786
          %s791 = smul.u32 %s27, 16
          %s792 = scalar_lea.vmem [#allocation2], %s791
          %793 = vst [vmem:[%s792] sm:$0xff] %v789
          %794 = vst [vmem:[%s792 + $0x8] sm:$0xff] %v790
          %p795 = scmp.eq.s32.totalorder %s27, 0
          // Predicated region
          $region45: #{tpu_custom_call.1} parent=43 // pred_check
            %p796 = pneg %p795
          $region46: #{tpu_custom_call.1} parent=43 // pred_check_branch
            %798 = sbr.rel (%p796) target = $region48
          $region47: #{tpu_custom_call.1} parent=43 // pred_region
            %vm799 = vcmask 7168
            %800 = vst.msk [vmem:[#allocation3] sm:$0xff] %vm799, 0.0
            %801 = vst.msk [vmem:[#allocation4] sm:$0xff] %vm799, 0.0
          $region48: #{tpu_custom_call.1} parent=43 // pred_fallthru
            _
          %v802 = vld [vmem:[#allocation3] sm:$0xff]
          %803 = vadd.xlane.f32.xlu0 %v789
          %v804 = vpop.xlane.xlu0 %803
          %805 = vadd.xlane.f32.xlu0 %v790
          %v806 = vpop.xlane.xlu0 %805
          %v807 = vadd.f32 %v804, %v806
          %v808 = vadd.f32 %v802, %v807
          %vm809 = vcmask 7168
          %810 = vst.msk [vmem:[#allocation3] sm:$0xff] %vm809, %v808
          %v811 = vld [vmem:[#allocation4] sm:$0xff]
          %v812 = vmul.f32 %v789, %v789
          %v813 = vmul.f32 %v790, %v790
          %814 = vadd.xlane.f32.xlu0 %v812
          %v815 = vpop.xlane.xlu0 %814
          %816 = vadd.xlane.f32.xlu0 %v813
          %v817 = vpop.xlane.xlu0 %816
          %v818 = vadd.f32 %v815, %v817
          %v819 = vadd.f32 %v811, %v818
          %820 = vst.msk [vmem:[#allocation4] sm:$0xff] %vm809, %v819
        $region44: #{tpu_custom_call.1} parent=39 // pred_fallthru
          _
        %p821 = scmp.eq.s32.totalorder %s26, 1
        // Predicated region
        $region49: #{tpu_custom_call.1} parent=39 // pred_check
          %p822 = pneg %p821
        $region50: #{tpu_custom_call.1} parent=39 // pred_check_branch
          %824 = sbr.rel (%p822) target = $region52
        $region51: #{tpu_custom_call.1} parent=39 // pred_region
          %p825 = scmp.eq.s32.totalorder %s27, 0
          // Predicated region
          $region53: #{tpu_custom_call.1} parent=51 // pred_check
            %p826 = pneg %p825
          $region54: #{tpu_custom_call.1} parent=51 // pred_check_branch
            %828 = sbr.rel (%p826) target = $region56
          $region55: #{tpu_custom_call.1} parent=51 // pred_region
            %v829 = vld [vmem:[#allocation3] sm:$0xff]
            %v830 = vmul.f32 %v829, 0.001953125
            %v831 = vld [vmem:[#allocation4] sm:$0xff]
            %v832 = vmul.f32 %v831, 0.001953125
            %v833 = vmul.f32 %v830, %v830
            %v834 = vsub.f32 %v832, %v833
            %v835 = vmax.f32 %v834, 0.0
            %v836 = vld [vmem:[%s3] sm:$0xff]
            %v837 = vadd.f32 %v835, 1e-05
            %v838 = vrsqrt.pop %v837
            %v839 = vmul.f32 %v836, %v838
            %vm840 = vcmask 7168
            %841 = vst.msk [vmem:[#allocation5] sm:$0xff] %vm840, %v839
            %v842 = vld [vmem:[%s4] sm:$0xff]
            %v843 = vmul.f32 %v830, %v839
            %v844 = vsub.f32 %v842, %v843
            %845 = vst.msk [vmem:[#allocation6] sm:$0xff] %vm840, %v844
          $region56: #{tpu_custom_call.1} parent=51 // pred_fallthru
            _
          %s846 = smul.u32 %s27, 16
          %s847 = scalar_lea.vmem [#allocation2], %s846
          %v848 = vld [vmem:[%s847] sm:$0xff]
          %v849 = vld [vmem:[%s847 + $0x8] sm:$0xff]
          %v850 = vld [vmem:[#allocation5] sm:$0xff]
          %852 = vset.pattern.permute.xlu0 0
          %853 = vperm.xlu0 %852, %v850
          %v854 = vpop.permute.xlu0 %853
          %v856 = vmul.f32 %v848, %v854
          %v857 = vmul.f32 %v849, %v854
          %v858 = vld [vmem:[#allocation6] sm:$0xff]
          %860 = vset.pattern.permute.xlu0 0
          %861 = vperm.xlu0 %860, %v858
          %v862 = vpop.permute.xlu0 %861
          %v864 = vadd.f32 %v856, %v862
          %v865 = vadd.f32 %v857, %v862
          %v866 = vmax.f32 %v864, 0.0
          %v867 = vmax.f32 %v865, 0.0
          %v868 = vld [vmem:[%s2] sm:$0xff]
          %v869 = vld [vmem:[%s2 + $0x8] sm:$0xff]
          %v870 = vld [vmem:[%s2 + $0x10] sm:$0xff]
          %v871 = vlaneseq
          %v872 = vand.u32 %v871, 127
          %vm873 = vcmp.gt.s32.totalorder %v872, 0
          %874 = vrot.lane.b32.xlu0 %v866, 1
          %v875 = vpop.permute.xlu0 %874
          %876 = vrot.lane.b32.xlu0 %v867, 1
          %v877 = vpop.permute.xlu0 %876
          %v878 = vsel %vm873, 1, 0
          %vm879 = vcmp.eq.s32.totalorder %v878, 1
          %v880 = vsel %vm879, %v875, 0.0
          %v881 = vsel %vm879, %v877, 0.0
          %vm882 = vcmp.lt.s32.totalorder %v872, 127
          %883 = vrot.lane.b32.xlu0 %v866, 127
          %v884 = vpop.permute.xlu0 %883
          %885 = vrot.lane.b32.xlu0 %v867, 127
          %v886 = vpop.permute.xlu0 %885
          %v887 = vsel %vm882, 1, 0
          %vm888 = vcmp.eq.s32.totalorder %v887, 1
          %v889 = vsel %vm888, %v884, 0.0
          %v890 = vsel %vm888, %v886, 0.0
          %vm891 = vcmask 64512
          %v893 = vsel %vm891, %v869, 0
          %895 = vmatprep.subr.mxu0 0.0
          %896 = vmatpush1.msra.mxu0 %v866
          %897 = vmatprep.subr.mxu0 0.0
          %898 = vmatpush1.msra.mxu0 0.0
          %899 = vmatprep.subr.mxu0 0.0
          %900 = vmatpush1.msra.mxu0 0.0
          %901 = vmatprep.subr.mxu0 0.0
          %902 = vmatpush1.msra.mxu0 0.0
          %903 = vmatprep.subr.mxu0 0.0
          %904 = vmatpush1.msra.mxu0 0.0
          %905 = vmatprep.subr.mxu0 0.0
          %906 = vmatpush1.msra.mxu0 0.0
          %907 = vmatprep.subr.mxu0 0.0
          %908 = vmatpush1.msra.mxu0 0.0
          %909 = vmatprep.subr.mxu0 0.0
          %910 = vmatpush1.msra.mxu0 0.0
          %911 = vmatprep.subr.mxu0 0.0
          %912 = vmatpush1.msra.mxu0 0.0
          %913 = vmatprep.subr.mxu0 0.0
          %914 = vmatpush1.msra.mxu0 0.0
          %915 = vmatprep.subr.mxu0 0.0
          %916 = vmatpush1.msra.mxu0 0.0
          %917 = vmatprep.subr.mxu0 0.0
          %918 = vmatpush1.msra.mxu0 0.0
          %919 = vmatprep.subr.mxu0 0.0
          %920 = vmatpush1.msra.mxu0 0.0
          %921 = vmatprep.subr.mxu0 0.0
          %922 = vmatpush1.msra.mxu0 0.0
          %923 = vmatprep.subr.mxu0 0.0
          %924 = vmatpush1.msra.mxu0 0.0
          %925 = vmatprep.subr.mxu0 0.0
          %926 = vmatpush1.msra.mxu0 0.0
          %927 = vmatprep.subr.mxu0 0.0
          %928 = vmatpush1.msra.mxu0 0.0
          %929 = vmatprep.subr.mxu0 0.0
          %930 = vmatpush1.msra.mxu0 0.0
          %931 = vmatprep.subr.mxu0 0.0
          %932 = vmatpush1.msra.mxu0 0.0
          %933 = vmatprep.subr.mxu0 0.0
          %934 = vmatpush1.msra.mxu0 0.0
          %935 = vmatprep.subr.mxu0 0.0
          %936 = vmatpush1.msra.mxu0 0.0
          %937 = vmatprep.subr.mxu0 0.0
          %938 = vmatpush1.msra.mxu0 0.0
          %939 = vmatprep.subr.mxu0 0.0
          %940 = vmatpush1.msra.mxu0 0.0
          %941 = vmatprep.subr.mxu0 0.0
          %942 = vmatpush1.msra.mxu0 0.0
          %943 = vmatprep.subr.mxu0 0.0
          %944 = vmatpush1.msra.mxu0 0.0
          %945 = vmatprep.subr.mxu0 0.0
          %946 = vmatpush1.msra.mxu0 0.0
          %947 = vmatprep.subr.mxu0 0.0
          %948 = vmatpush1.msra.mxu0 0.0
          %949 = vmatprep.subr.mxu0 0.0
          %950 = vmatpush1.msra.mxu0 0.0
          %951 = vmatprep.subr.mxu0 0.0
          %952 = vmatpush1.msra.mxu0 0.0
          %953 = vmatprep.subr.mxu0 0.0
          %954 = vmatpush1.msra.mxu0 0.0
          %955 = vmatprep.subr.mxu0 0.0
          %956 = vmatpush1.msra.mxu0 0.0
          %957 = vmatprep.subr.mxu0 0.0
          %958 = vmatpush1.msra.mxu0 0.0
          %959 = vmatprep.mubr.f32.mxu0 0.0
          %960 = vmatmul.mubr.f32.gmra.mrb[0].mxu0 %v893
          %v961 = vpop.f32.mrb[0].mxu0
          %v962 = vadd.f32 0.0, %v961
          %v963 = vpop.f32.mrb[0].mxu0
          %964 = vdwg.mxu0
          %965 = vmatprep.subr.mxu0 0.0
          %966 = vmatpush1.msra.mxu0 %v867
          %967 = vmatprep.subr.mxu0 0.0
          %968 = vmatpush1.msra.mxu0 0.0
          %969 = vmatprep.subr.mxu0 0.0
          %970 = vmatpush1.msra.mxu0 0.0
          %971 = vmatprep.subr.mxu0 0.0
          %972 = vmatpush1.msra.mxu0 0.0
          %973 = vmatprep.subr.mxu0 0.0
          %974 = vmatpush1.msra.mxu0 0.0
          %975 = vmatprep.subr.mxu0 0.0
          %976 = vmatpush1.msra.mxu0 0.0
          %977 = vmatprep.subr.mxu0 0.0
          %978 = vmatpush1.msra.mxu0 0.0
          %979 = vmatprep.subr.mxu0 0.0
          %980 = vmatpush1.msra.mxu0 0.0
          %981 = vmatprep.subr.mxu0 0.0
          %982 = vmatpush1.msra.mxu0 0.0
          %983 = vmatprep.subr.mxu0 0.0
          %984 = vmatpush1.msra.mxu0 0.0
          %985 = vmatprep.subr.mxu0 0.0
          %986 = vmatpush1.msra.mxu0 0.0
          %987 = vmatprep.subr.mxu0 0.0
          %988 = vmatpush1.msra.mxu0 0.0
          %989 = vmatprep.subr.mxu0 0.0
          %990 = vmatpush1.msra.mxu0 0.0
          %991 = vmatprep.subr.mxu0 0.0
          %992 = vmatpush1.msra.mxu0 0.0
          %993 = vmatprep.subr.mxu0 0.0
          %994 = vmatpush1.msra.mxu0 0.0
          %995 = vmatprep.subr.mxu0 0.0
          %996 = vmatpush1.msra.mxu0 0.0
          %997 = vmatprep.subr.mxu0 0.0
          %998 = vmatpush1.msra.mxu0 0.0
          %999 = vmatprep.subr.mxu0 0.0
          %1000 = vmatpush1.msra.mxu0 0.0
          %1001 = vmatprep.subr.mxu0 0.0
          %1002 = vmatpush1.msra.mxu0 0.0
          %1003 = vmatprep.subr.mxu0 0.0
          %1004 = vmatpush1.msra.mxu0 0.0
          %1005 = vmatprep.subr.mxu0 0.0
          %1006 = vmatpush1.msra.mxu0 0.0
          %1007 = vmatprep.subr.mxu0 0.0
          %1008 = vmatpush1.msra.mxu0 0.0
          %1009 = vmatprep.subr.mxu0 0.0
          %1010 = vmatpush1.msra.mxu0 0.0
          %1011 = vmatprep.subr.mxu0 0.0
          %1012 = vmatpush1.msra.mxu0 0.0
          %1013 = vmatprep.subr.mxu0 0.0
          %1014 = vmatpush1.msra.mxu0 0.0
          %1015 = vmatprep.subr.mxu0 0.0
          %1016 = vmatpush1.msra.mxu0 0.0
          %1017 = vmatprep.subr.mxu0 0.0
          %1018 = vmatpush1.msra.mxu0 0.0
          %1019 = vmatprep.subr.mxu0 0.0
          %1020 = vmatpush1.msra.mxu0 0.0
          %1021 = vmatprep.subr.mxu0 0.0
          %1022 = vmatpush1.msra.mxu0 0.0
          %1023 = vmatprep.subr.mxu0 0.0
          %1024 = vmatpush1.msra.mxu0 0.0
          %1025 = vmatprep.subr.mxu0 0.0
          %1026 = vmatpush1.msra.mxu0 0.0
          %1027 = vmatprep.subr.mxu0 0.0
          %1028 = vmatpush1.msra.mxu0 0.0
          %1029 = vmatprep.mubr.f32.mxu0 0.0
          %1030 = vmatmul.mubr.f32.gmra.mrb[0].mxu0 %v893
          %v1031 = vpop.f32.mrb[0].mxu0
          %v1032 = vadd.f32 0.0, %v1031
          %v1033 = vpop.f32.mrb[0].mxu0
          %1034 = vdwg.mxu0
          %v1036 = vsel %vm891, %v868, 0
          %1038 = vmatprep.subr.mxu0 0.0
          %1039 = vmatpush1.msra.mxu0 %v880
          %1040 = vmatprep.subr.mxu0 0.0
          %1041 = vmatpush1.msra.mxu0 0.0
          %1042 = vmatprep.subr.mxu0 0.0
          %1043 = vmatpush1.msra.mxu0 0.0
          %1044 = vmatprep.subr.mxu0 0.0
          %1045 = vmatpush1.msra.mxu0 0.0
          %1046 = vmatprep.subr.mxu0 0.0
          %1047 = vmatpush1.msra.mxu0 0.0
          %1048 = vmatprep.subr.mxu0 0.0
          %1049 = vmatpush1.msra.mxu0 0.0
          %1050 = vmatprep.subr.mxu0 0.0
          %1051 = vmatpush1.msra.mxu0 0.0
          %1052 = vmatprep.subr.mxu0 0.0
          %1053 = vmatpush1.msra.mxu0 0.0
          %1054 = vmatprep.subr.mxu0 0.0
          %1055 = vmatpush1.msra.mxu0 0.0
          %1056 = vmatprep.subr.mxu0 0.0
          %1057 = vmatpush1.msra.mxu0 0.0
          %1058 = vmatprep.subr.mxu0 0.0
          %1059 = vmatpush1.msra.mxu0 0.0
          %1060 = vmatprep.subr.mxu0 0.0
          %1061 = vmatpush1.msra.mxu0 0.0
          %1062 = vmatprep.subr.mxu0 0.0
          %1063 = vmatpush1.msra.mxu0 0.0
          %1064 = vmatprep.subr.mxu0 0.0
          %1065 = vmatpush1.msra.mxu0 0.0
          %1066 = vmatprep.subr.mxu0 0.0
          %1067 = vmatpush1.msra.mxu0 0.0
          %1068 = vmatprep.subr.mxu0 0.0
          %1069 = vmatpush1.msra.mxu0 0.0
          %1070 = vmatprep.subr.mxu0 0.0
          %1071 = vmatpush1.msra.mxu0 0.0
          %1072 = vmatprep.subr.mxu0 0.0
          %1073 = vmatpush1.msra.mxu0 0.0
          %1074 = vmatprep.subr.mxu0 0.0
          %1075 = vmatpush1.msra.mxu0 0.0
          %1076 = vmatprep.subr.mxu0 0.0
          %1077 = vmatpush1.msra.mxu0 0.0
          %1078 = vmatprep.subr.mxu0 0.0
          %1079 = vmatpush1.msra.mxu0 0.0
          %1080 = vmatprep.subr.mxu0 0.0
          %1081 = vmatpush1.msra.mxu0 0.0
          %1082 = vmatprep.subr.mxu0 0.0
          %1083 = vmatpush1.msra.mxu0 0.0
          %1084 = vmatprep.subr.mxu0 0.0
          %1085 = vmatpush1.msra.mxu0 0.0
          %1086 = vmatprep.subr.mxu0 0.0
          %1087 = vmatpush1.msra.mxu0 0.0
          %1088 = vmatprep.subr.mxu0 0.0
          %1089 = vmatpush1.msra.mxu0 0.0
          %1090 = vmatprep.subr.mxu0 0.0
          %1091 = vmatpush1.msra.mxu0 0.0
          %1092 = vmatprep.subr.mxu0 0.0
          %1093 = vmatpush1.msra.mxu0 0.0
          %1094 = vmatprep.subr.mxu0 0.0
          %1095 = vmatpush1.msra.mxu0 0.0
          %1096 = vmatprep.subr.mxu0 0.0
          %1097 = vmatpush1.msra.mxu0 0.0
          %1098 = vmatprep.subr.mxu0 0.0
          %1099 = vmatpush1.msra.mxu0 0.0
          %1100 = vmatprep.subr.mxu0 0.0
          %1101 = vmatpush1.msra.mxu0 0.0
          %1102 = vmatprep.mubr.f32.mxu0 0.0
          %1103 = vmatmul.mubr.f32.gmra.mrb[0].mxu0 %v1036
          %v1104 = vpop.f32.mrb[0].mxu0
          %v1105 = vadd.f32 %v962, %v1104
          %v1106 = vpop.f32.mrb[0].mxu0
          %1107 = vdwg.mxu0
          %1108 = vmatprep.subr.mxu0 0.0
          %1109 = vmatpush1.msra.mxu0 %v881
          %1110 = vmatprep.subr.mxu0 0.0
          %1111 = vmatpush1.msra.mxu0 0.0
          %1112 = vmatprep.subr.mxu0 0.0
          %1113 = vmatpush1.msra.mxu0 0.0
          %1114 = vmatprep.subr.mxu0 0.0
          %1115 = vmatpush1.msra.mxu0 0.0
          %1116 = vmatprep.subr.mxu0 0.0
          %1117 = vmatpush1.msra.mxu0 0.0
          %1118 = vmatprep.subr.mxu0 0.0
          %1119 = vmatpush1.msra.mxu0 0.0
          %1120 = vmatprep.subr.mxu0 0.0
          %1121 = vmatpush1.msra.mxu0 0.0
          %1122 = vmatprep.subr.mxu0 0.0
          %1123 = vmatpush1.msra.mxu0 0.0
          %1124 = vmatprep.subr.mxu0 0.0
          %1125 = vmatpush1.msra.mxu0 0.0
          %1126 = vmatprep.subr.mxu0 0.0
          %1127 = vmatpush1.msra.mxu0 0.0
          %1128 = vmatprep.subr.mxu0 0.0
          %1129 = vmatpush1.msra.mxu0 0.0
          %1130 = vmatprep.subr.mxu0 0.0
          %1131 = vmatpush1.msra.mxu0 0.0
          %1132 = vmatprep.subr.mxu0 0.0
          %1133 = vmatpush1.msra.mxu0 0.0
          %1134 = vmatprep.subr.mxu0 0.0
          %1135 = vmatpush1.msra.mxu0 0.0
          %1136 = vmatprep.subr.mxu0 0.0
          %1137 = vmatpush1.msra.mxu0 0.0
          %1138 = vmatprep.subr.mxu0 0.0
          %1139 = vmatpush1.msra.mxu0 0.0
          %1140 = vmatprep.subr.mxu0 0.0
          %1141 = vmatpush1.msra.mxu0 0.0
          %1142 = vmatprep.subr.mxu0 0.0
          %1143 = vmatpush1.msra.mxu0 0.0
          %1144 = vmatprep.subr.mxu0 0.0
          %1145 = vmatpush1.msra.mxu0 0.0
          %1146 = vmatprep.subr.mxu0 0.0
          %1147 = vmatpush1.msra.mxu0 0.0
          %1148 = vmatprep.subr.mxu0 0.0
          %1149 = vmatpush1.msra.mxu0 0.0
          %1150 = vmatprep.subr.mxu0 0.0
          %1151 = vmatpush1.msra.mxu0 0.0
          %1152 = vmatprep.subr.mxu0 0.0
          %1153 = vmatpush1.msra.mxu0 0.0
          %1154 = vmatprep.subr.mxu0 0.0
          %1155 = vmatpush1.msra.mxu0 0.0
          %1156 = vmatprep.subr.mxu0 0.0
          %1157 = vmatpush1.msra.mxu0 0.0
          %1158 = vmatprep.subr.mxu0 0.0
          %1159 = vmatpush1.msra.mxu0 0.0
          %1160 = vmatprep.subr.mxu0 0.0
          %1161 = vmatpush1.msra.mxu0 0.0
          %1162 = vmatprep.subr.mxu0 0.0
          %1163 = vmatpush1.msra.mxu0 0.0
          %1164 = vmatprep.subr.mxu0 0.0
          %1165 = vmatpush1.msra.mxu0 0.0
          %1166 = vmatprep.subr.mxu0 0.0
          %1167 = vmatpush1.msra.mxu0 0.0
          %1168 = vmatprep.subr.mxu0 0.0
          %1169 = vmatpush1.msra.mxu0 0.0
          %1170 = vmatprep.subr.mxu0 0.0
          %1171 = vmatpush1.msra.mxu0 0.0
          %1172 = vmatprep.mubr.f32.mxu0 0.0
          %1173 = vmatmul.mubr.f32.gmra.mrb[0].mxu0 %v1036
          %v1174 = vpop.f32.mrb[0].mxu0
          %v1175 = vadd.f32 %v1032, %v1174
          %v1176 = vpop.f32.mrb[0].mxu0
          %1177 = vdwg.mxu0
          %v1179 = vsel %vm891, %v870, 0
          %1181 = vmatprep.subr.mxu0 0.0
          %1182 = vmatpush1.msra.mxu0 %v889
          %1183 = vmatprep.subr.mxu0 0.0
          %1184 = vmatpush1.msra.mxu0 0.0
          %1185 = vmatprep.subr.mxu0 0.0
          %1186 = vmatpush1.msra.mxu0 0.0
          %1187 = vmatprep.subr.mxu0 0.0
          %1188 = vmatpush1.msra.mxu0 0.0
          %1189 = vmatprep.subr.mxu0 0.0
          %1190 = vmatpush1.msra.mxu0 0.0
          %1191 = vmatprep.subr.mxu0 0.0
          %1192 = vmatpush1.msra.mxu0 0.0
          %1193 = vmatprep.subr.mxu0 0.0
          %1194 = vmatpush1.msra.mxu0 0.0
          %1195 = vmatprep.subr.mxu0 0.0
          %1196 = vmatpush1.msra.mxu0 0.0
          %1197 = vmatprep.subr.mxu0 0.0
          %1198 = vmatpush1.msra.mxu0 0.0
          %1199 = vmatprep.subr.mxu0 0.0
          %1200 = vmatpush1.msra.mxu0 0.0
          %1201 = vmatprep.subr.mxu0 0.0
          %1202 = vmatpush1.msra.mxu0 0.0
          %1203 = vmatprep.subr.mxu0 0.0
          %1204 = vmatpush1.msra.mxu0 0.0
          %1205 = vmatprep.subr.mxu0 0.0
          %1206 = vmatpush1.msra.mxu0 0.0
          %1207 = vmatprep.subr.mxu0 0.0
          %1208 = vmatpush1.msra.mxu0 0.0
          %1209 = vmatprep.subr.mxu0 0.0
          %1210 = vmatpush1.msra.mxu0 0.0
          %1211 = vmatprep.subr.mxu0 0.0
          %1212 = vmatpush1.msra.mxu0 0.0
          %1213 = vmatprep.subr.mxu0 0.0
          %1214 = vmatpush1.msra.mxu0 0.0
          %1215 = vmatprep.subr.mxu0 0.0
          %1216 = vmatpush1.msra.mxu0 0.0
          %1217 = vmatprep.subr.mxu0 0.0
          %1218 = vmatpush1.msra.mxu0 0.0
          %1219 = vmatprep.subr.mxu0 0.0
          %1220 = vmatpush1.msra.mxu0 0.0
          %1221 = vmatprep.subr.mxu0 0.0
          %1222 = vmatpush1.msra.mxu0 0.0
          %1223 = vmatprep.subr.mxu0 0.0
          %1224 = vmatpush1.msra.mxu0 0.0
          %1225 = vmatprep.subr.mxu0 0.0
          %1226 = vmatpush1.msra.mxu0 0.0
          %1227 = vmatprep.subr.mxu0 0.0
          %1228 = vmatpush1.msra.mxu0 0.0
          %1229 = vmatprep.subr.mxu0 0.0
          %1230 = vmatpush1.msra.mxu0 0.0
          %1231 = vmatprep.subr.mxu0 0.0
          %1232 = vmatpush1.msra.mxu0 0.0
          %1233 = vmatprep.subr.mxu0 0.0
          %1234 = vmatpush1.msra.mxu0 0.0
          %1235 = vmatprep.subr.mxu0 0.0
          %1236 = vmatpush1.msra.mxu0 0.0
          %1237 = vmatprep.subr.mxu0 0.0
          %1238 = vmatpush1.msra.mxu0 0.0
          %1239 = vmatprep.subr.mxu0 0.0
          %1240 = vmatpush1.msra.mxu0 0.0
          %1241 = vmatprep.subr.mxu0 0.0
          %1242 = vmatpush1.msra.mxu0 0.0
          %1243 = vmatprep.subr.mxu0 0.0
          %1244 = vmatpush1.msra.mxu0 0.0
          %1245 = vmatprep.mubr.f32.mxu0 0.0
          %1246 = vmatmul.mubr.f32.gmra.mrb[0].mxu0 %v1179
          %v1247 = vpop.f32.mrb[0].mxu0
          %v1248 = vadd.f32 0.0, %v1247
          %v1249 = vpop.f32.mrb[0].mxu0
          %1250 = vdwg.mxu0
          %1251 = vmatprep.subr.mxu0 0.0
          %1252 = vmatpush1.msra.mxu0 %v890
          %1253 = vmatprep.subr.mxu0 0.0
          %1254 = vmatpush1.msra.mxu0 0.0
          %1255 = vmatprep.subr.mxu0 0.0
          %1256 = vmatpush1.msra.mxu0 0.0
          %1257 = vmatprep.subr.mxu0 0.0
          %1258 = vmatpush1.msra.mxu0 0.0
          %1259 = vmatprep.subr.mxu0 0.0
          %1260 = vmatpush1.msra.mxu0 0.0
          %1261 = vmatprep.subr.mxu0 0.0
          %1262 = vmatpush1.msra.mxu0 0.0
          %1263 = vmatprep.subr.mxu0 0.0
          %1264 = vmatpush1.msra.mxu0 0.0
          %1265 = vmatprep.subr.mxu0 0.0
          %1266 = vmatpush1.msra.mxu0 0.0
          %1267 = vmatprep.subr.mxu0 0.0
          %1268 = vmatpush1.msra.mxu0 0.0
          %1269 = vmatprep.subr.mxu0 0.0
          %1270 = vmatpush1.msra.mxu0 0.0
          %1271 = vmatprep.subr.mxu0 0.0
          %1272 = vmatpush1.msra.mxu0 0.0
          %1273 = vmatprep.subr.mxu0 0.0
          %1274 = vmatpush1.msra.mxu0 0.0
          %1275 = vmatprep.subr.mxu0 0.0
          %1276 = vmatpush1.msra.mxu0 0.0
          %1277 = vmatprep.subr.mxu0 0.0
          %1278 = vmatpush1.msra.mxu0 0.0
          %1279 = vmatprep.subr.mxu0 0.0
          %1280 = vmatpush1.msra.mxu0 0.0
          %1281 = vmatprep.subr.mxu0 0.0
          %1282 = vmatpush1.msra.mxu0 0.0
          %1283 = vmatprep.subr.mxu0 0.0
          %1284 = vmatpush1.msra.mxu0 0.0
          %1285 = vmatprep.subr.mxu0 0.0
          %1286 = vmatpush1.msra.mxu0 0.0
          %1287 = vmatprep.subr.mxu0 0.0
          %1288 = vmatpush1.msra.mxu0 0.0
          %1289 = vmatprep.subr.mxu0 0.0
          %1290 = vmatpush1.msra.mxu0 0.0
          %1291 = vmatprep.subr.mxu0 0.0
          %1292 = vmatpush1.msra.mxu0 0.0
          %1293 = vmatprep.subr.mxu0 0.0
          %1294 = vmatpush1.msra.mxu0 0.0
          %1295 = vmatprep.subr.mxu0 0.0
          %1296 = vmatpush1.msra.mxu0 0.0
          %1297 = vmatprep.subr.mxu0 0.0
          %1298 = vmatpush1.msra.mxu0 0.0
          %1299 = vmatprep.subr.mxu0 0.0
          %1300 = vmatpush1.msra.mxu0 0.0
          %1301 = vmatprep.subr.mxu0 0.0
          %1302 = vmatpush1.msra.mxu0 0.0
          %1303 = vmatprep.subr.mxu0 0.0
          %1304 = vmatpush1.msra.mxu0 0.0
          %1305 = vmatprep.subr.mxu0 0.0
          %1306 = vmatpush1.msra.mxu0 0.0
          %1307 = vmatprep.subr.mxu0 0.0
          %1308 = vmatpush1.msra.mxu0 0.0
          %1309 = vmatprep.subr.mxu0 0.0
          %1310 = vmatpush1.msra.mxu0 0.0
          %1311 = vmatprep.subr.mxu0 0.0
          %1312 = vmatpush1.msra.mxu0 0.0
          %1313 = vmatprep.subr.mxu0 0.0
          %1314 = vmatpush1.msra.mxu0 0.0
          %1315 = vmatprep.mubr.f32.mxu0 0.0
          %1316 = vmatmul.mubr.f32.gmra.mrb[0].mxu0 %v1179
          %v1317 = vpop.f32.mrb[0].mxu0
          %v1318 = vadd.f32 0.0, %v1317
          %v1319 = vpop.f32.mrb[0].mxu0
          %1320 = vdwg.mxu0
          %v1321 = vadd.f32 %v1105, %v1248
          %v1322 = vadd.f32 %v1175, %v1318
          %1323 = vst [vmem:[%s292] sm:$0xff] %v1321
          %1324 = vst [vmem:[%s292 + $0x8] sm:$0xff] %v1322
          // Predicated region
          $region57: #{tpu_custom_call.1} parent=51 // pred_check
            %p1325 = pneg %p825
          $region58: #{tpu_custom_call.1} parent=51 // pred_check_branch
            %1327 = sbr.rel (%p1325) target = $region60
          $region59: #{tpu_custom_call.1} parent=51 // pred_region
            %vm1328 = vcmask 7168
            %1329 = vst.msk [vmem:[%s6] sm:$0xff] %vm1328, 0.0
            %1330 = vst.msk [vmem:[%s7] sm:$0xff] %vm1328, 0.0
          $region60: #{tpu_custom_call.1} parent=51 // pred_fallthru
            _
          %v1331 = vld [vmem:[%s6] sm:$0xff]
          %1332 = vadd.xlane.f32.xlu0 %v1321
          %v1333 = vpop.xlane.xlu0 %1332
          %1334 = vadd.xlane.f32.xlu0 %v1322
          %v1335 = vpop.xlane.xlu0 %1334
          %v1336 = vadd.f32 %v1333, %v1335
          %v1337 = vadd.f32 %v1331, %v1336
          %vm1338 = vcmask 7168
          %1339 = vst.msk [vmem:[%s6] sm:$0xff] %vm1338, %v1337
          %v1340 = vld [vmem:[%s7] sm:$0xff]
          %v1341 = vmul.f32 %v1321, %v1321
          %v1342 = vmul.f32 %v1322, %v1322
          %1343 = vadd.xlane.f32.xlu0 %v1341
          %v1344 = vpop.xlane.xlu0 %1343
          %1345 = vadd.xlane.f32.xlu0 %v1342
          %v1346 = vpop.xlane.xlu0 %1345
          %v1347 = vadd.f32 %v1344, %v1346
          %v1348 = vadd.f32 %v1340, %v1347
          %1349 = vst.msk [vmem:[%s7] sm:$0xff] %vm1338, %v1348
        $region52: #{tpu_custom_call.1} parent=39 // pred_fallthru
          _
        %s1350 = sand.u32 %s160, 1
        %s1351 = scalar_lea.sflag [#allocation8], %s1350
        %s1352 = sand.u32 %s160, 1
        %s1353 = smul.addr %s1352, 16
        %s1354 = scalar_lea.vmem [#allocation7], %s1353
        // Predicated region
        $region61: #{tpu_custom_call.1} parent=39 // pred_check
          %p1355 = pneg %p170
        $region62: #{tpu_custom_call.1} parent=39 // pred_check_branch
          %1357 = sbr.rel (%p1355) target = $region64
        $region63: #{tpu_custom_call.1} parent=39 // pred_region
          %s1358 = smul.u32 %s27, %s26
          %s1359 = smul.u32 2, %s1358
          %s1361 = ssub.s32 256, 256
          %1362 = vsyncadd %s1351, %s1361
          %s1363 = smul.addr %s1359, 128
          %s1364 = scalar_lea.hbm %s5, %s1363
          %s1365 = sshll.u32 %s1354, 4
          %s1366 = int_to_ptr.vmem [resolvable:$true] %s1365
          %1371 = dma.vmem_to_hbm [thread:$0]  %s1366, 256, %s1364, %s1351, 128, 128, 8
        $region64: #{tpu_custom_call.1} parent=39 // pred_fallthru
          _
        // Predicated region
        $region65: #{tpu_custom_call.1} parent=39 // pred_check
          %p1372 = pneg %p191
        $region66: #{tpu_custom_call.1} parent=39 // pred_check_branch
          %1374 = sbr.rel (%p1372) target = $region68
        $region67: #{tpu_custom_call.1} parent=39 // pred_region
          _
        $region68: #{tpu_custom_call.1} parent=39 // pred_fallthru
          _
        // Predicated region
        $region69: #{tpu_custom_call.1} parent=39 // pred_check
          %p1375 = pneg %p212
        $region70: #{tpu_custom_call.1} parent=39 // pred_check_branch
          %1377 = sbr.rel (%p1375) target = $region72
        $region71: #{tpu_custom_call.1} parent=39 // pred_region
          _
        $region72: #{tpu_custom_call.1} parent=39 // pred_fallthru
          _
        // Predicated region
        $region73: #{tpu_custom_call.1} parent=39 // pred_check
          %p1378 = pneg %p191
        $region74: #{tpu_custom_call.1} parent=39 // pred_check_branch
          %1380 = sbr.rel (%p1378) target = $region76
        $region75: #{tpu_custom_call.1} parent=39 // pred_region
          _
        $region76: #{tpu_custom_call.1} parent=39 // pred_fallthru
          _
        // Predicated region
        $region77: #{tpu_custom_call.1} parent=39 // pred_check
          %p1381 = pneg %p212
        $region78: #{tpu_custom_call.1} parent=39 // pred_check_branch
          %1383 = sbr.rel (%p1381) target = $region80
        $region79: #{tpu_custom_call.1} parent=39 // pred_region
          _
        $region80: #{tpu_custom_call.1} parent=39 // pred_fallthru
          _
      $region40: #{tpu_custom_call.1} parent=5 // pred_fallthru
        _
      %p1384 = scmp.le.s32.totalorder 2, %s17
      // Predicated region
      $region81: #{tpu_custom_call.1} parent=5 // pred_check
        %p1385 = pneg %p1384
      $region82: #{tpu_custom_call.1} parent=5 // pred_check_branch
        %1387 = sbr.rel (%p1385) target = $region84
      $region83: #{tpu_custom_call.1} parent=5 // pred_region
        %s1388 = ssub.s32 %s17, 2
        // Predicated region
        $region85: #{tpu_custom_call.1} parent=83 // pred_check
          %p1389 = pneg %p176
        $region86: #{tpu_custom_call.1} parent=83 // pred_check_branch
          %1391 = sbr.rel (%p1389) target = $region88
        $region87: #{tpu_custom_call.1} parent=83 // pred_region
          %s1392 = sand.u32 %s161, 1
          %s1393 = scalar_lea.sflag [#allocation8], %s1392
          %s1394 = sand.u32 %s161, 1
          %s1395 = smul.addr %s1394, 16
          %s1396 = scalar_lea.vmem [#allocation7], %s1395
          %1397 = dma.done %s1393, 256
        $region88: #{tpu_custom_call.1} parent=83 // pred_fallthru
          _
      $region84: #{tpu_custom_call.1} parent=5 // pred_fallthru
        _
    $region6: #{tpu_custom_call.1} parent=1 // loop_footer
      %s21 = sadd.s32 1, %s17
    $region7: #{tpu_custom_call.1} parent=1 // loop_footer_branch
      %16 = sbr.rel target = $region3
    $region8: #{tpu_custom_call.1} parent=1 // loop_exit
      _
    %1398 = vsyncpa [#allocation8], 1
    %s1399 = scalar_lea.sflag [#allocation8], 1
    %1400 = vsyncpa %s1399, 1

</llo_original>
